<compile_context>
chip_gen: v7x
topology: tpu7x:2x2x1
jax: 0.10.0
libtpu: 0.0.40
codegen_flags: <defaults>
</compile_context>

<pallas_src>
import functools

import jax
import jax.numpy as jnp
from jax.experimental import pallas as pl
from jax.experimental.pallas import tpu as pltpu

# ----------------------------- configuration ------------------------------
B = 2                # batch
CIN = 3              # image channels
H = W = 16           # spatial
IN_PLANES = 32       # backbone feature width (stand-in for resnet in_planes)
NUM_HIDDEN_LAYERS = 1
NUM_HIDDEN_UNITS = 32
NUM_CLASSES = 3
EPS = 1e-5
K_RAW = 9 * CIN      # 27 = im2col contraction size for a 3x3 conv
K_PAD = 32           # pad K to 32 (was 128: ~79% of that contraction was zeros)


# ------------------------------ fused kernel -------------------------------
def _classifier_kernel(patches_ref, wconv_ref, pool_ref, w1_ref, b1_ref,
                       wo_ref, bo_ref, out_ref, *, n_rows):
    """Fused forward pass.

    patches_ref : (B*H*W, K_PAD)       bf16 im2col patches (zero-padded K)
    wconv_ref   : (K_PAD, IN_PLANES)   bf16 conv weight, pre-packed
    pool_ref    : (B, B*H*W)           f32 segment-averaging matrix (1/HW blocks)
    w1_ref      : (IN_PLANES, NUM_HIDDEN_UNITS)   (= torch weight transposed)
    b1_ref      : (1, NUM_HIDDEN_UNITS)
    wo_ref      : (NUM_HIDDEN_UNITS, NUM_CLASSES)
    bo_ref      : (1, NUM_CLASSES)
    out_ref     : (B, NUM_CLASSES)
    """
    # ---- conv stem: single MXU matmul (bf16 operands, f32 accumulate) ------
    acc = jnp.dot(patches_ref[...], wconv_ref[...],
                  preferred_element_type=jnp.float32)              # (N, Cout) f32

    # ---- BatchNorm2d stats on the MXU (single sweep: var = E[x^2]-mean^2) --
    invn = jnp.full((1, n_rows), 1.0 / n_rows, dtype=jnp.float32)
    mean = jnp.dot(invn, acc, preferred_element_type=jnp.float32)          # (1, Cout)
    ex2 = jnp.dot(invn, acc * acc, preferred_element_type=jnp.float32)     # (1, Cout)
    var = ex2 - mean * mean
    y = jnp.maximum((acc - mean) * jax.lax.rsqrt(var + EPS), 0.0)          # (N, Cout)

    # ---- global average pool: one MXU matmul with the segment matrix -------
    feats = jnp.dot(pool_ref[...], y, preferred_element_type=jnp.float32)  # (B, Cout)

    # ---- layer1: Linear -> ReLU -> BatchNorm1d (batch stats, gamma=1, beta=0)
    h1 = jnp.dot(feats, w1_ref[...],
                 preferred_element_type=jnp.float32) + b1_ref[...]
    h1 = jnp.maximum(h1, 0.0)
    m1 = jnp.mean(h1, axis=0, keepdims=True)
    e1 = jnp.mean(h1 * h1, axis=0, keepdims=True)
    v1 = e1 - m1 * m1
    h1 = (h1 - m1) * jax.lax.rsqrt(v1 + EPS)

    # ---- out_layer: Linear --------------------------------------------------
    out_ref[...] = (jnp.dot(h1, wo_ref[...],
                            preferred_element_type=jnp.float32) + bo_ref[...])


# ------------------------------ wrapper -------------------------------------
_VMEM = pl.BlockSpec(memory_space=pltpu.MemorySpace.VMEM)


@jax.jit
def classifier_forward(x_nchw, params):
    b, cin, h, w = x_nchw.shape
    hw = h * w
    n_rows = b * hw
    cout = params["w_conv"].shape[1]

    # NCHW -> NHWC, spatial pad, im2col, K pad, bf16 cast: cheap XLA ops fused
    # into a single pre-arranged input for the kernel (half the HBM bytes vs f32).
    x_nhwc = jnp.transpose(x_nchw, (0, 2, 3, 1))
    x_pad = jnp.pad(x_nhwc, ((0, 0), (1, 1), (1, 1), (0, 0)))
    taps = [x_pad[:, kh:kh + h, kw:kw + w, :]
            for kh in range(3) for kw in range(3)]
    patches = jnp.concatenate(taps, axis=-1).reshape(n_rows, 9 * cin)
    patches = jnp.pad(patches, ((0, 0), (0, K_PAD - 9 * cin)))      # (N, 32)
    patches = patches.astype(jnp.bfloat16)

    # Segment-averaging pool matrix: pool[i, j] = 1/HW if j // HW == i else 0.
    # Shape-only constant -> folded at compile time.
    pool = jnp.repeat(jnp.eye(b, dtype=jnp.float32), hw, axis=1) / hw   # (B, N)

    kernel = functools.partial(_classifier_kernel, n_rows=n_rows)

    flops = (2 * n_rows * K_PAD * cout          # conv matmul
             + 2 * (2 * n_rows * cout)          # mean + E[x^2] matmuls
             + 2 * b * n_rows * cout            # pool matmul
             + 2 * b * cout * NUM_HIDDEN_UNITS
             + 2 * b * NUM_HIDDEN_UNITS * NUM_CLASSES)
    bytes_accessed = (2 * (patches.size + params["w_conv"].size)    # bf16 inputs
                      + 4 * (pool.size + params["w1"].size + params["b1"].size
                             + params["wo"].size + params["bo"].size
                             + b * NUM_CLASSES))

    return pl.pallas_call(
        kernel,
        out_shape=jax.ShapeDtypeStruct((b, NUM_CLASSES), jnp.float32),
        in_specs=[_VMEM] * 7,
        out_specs=_VMEM,
        cost_estimate=pl.CostEstimate(flops=flops,
                                      transcendentals=cout + NUM_HIDDEN_UNITS,
                                      bytes_accessed=bytes_accessed),
    )(patches, params["w_conv"], pool, params["w1"], params["b1"],
      params["wo"], params["bo"])


# --------------------------- deterministic params --------------------------
def init_params(key):
    k_conv, k_w1, k_b1, k_wo, k_bo = jax.random.split(key, 5)

    # Conv2d: kaiming_normal_ (fan_in = Cin*3*3, gain = sqrt(2)), bias-free.
    fan_in_conv = CIN * 3 * 3
    w_conv = jax.random.normal(k_conv, (3, 3, CIN, IN_PLANES), jnp.float32) \
        * jnp.sqrt(2.0 / fan_in_conv)
    # Pre-pack for the kernel: HWIO -> (27, Cout), zero-pad K to 32, cast bf16.
    w_conv_p = jnp.pad(w_conv.reshape(K_RAW, IN_PLANES),
                       ((0, K_PAD - K_RAW), (0, 0))).astype(jnp.bfloat16)

    # nn.Linear default init: U(-1/sqrt(fan_in), 1/sqrt(fan_in)).
    k1 = 1.0 / jnp.sqrt(IN_PLANES)
    w1 = jax.random.uniform(k_w1, (IN_PLANES, NUM_HIDDEN_UNITS), jnp.float32, -k1, k1)
    b1 = jax.random.uniform(k_b1, (1, NUM_HIDDEN_UNITS), jnp.float32, -k1, k1)

    ko = 1.0 / jnp.sqrt(NUM_HIDDEN_UNITS)
    wo = jax.random.uniform(k_wo, (NUM_HIDDEN_UNITS, NUM_CLASSES), jnp.float32, -ko, ko)
    bo = jax.random.uniform(k_bo, (1, NUM_CLASSES), jnp.float32, -ko, ko)

    return {"w_conv": w_conv_p, "w1": w1, "b1": b1, "wo": wo, "bo": bo}


# ---------------------------------- main ------------------------------------
if __name__ == "__main__":
    key = jax.random.PRNGKey(0)
    k_x, k_p = jax.random.split(key)

    x = jax.random.normal(k_x, (B, CIN, H, W), jnp.float32)   # NCHW, like PyTorch
    params = init_params(k_p)

    logits = classifier_forward(x, params)
    jax.block_until_ready(logits)

    assert logits.shape == (B, NUM_CLASSES), logits.shape
    assert bool(jnp.all(jnp.isfinite(logits)))
    print("KERNEL_OK")
</pallas_src>

<mosaic_0001>
module attributes {stable_mosaic.version = 11 : i64} {
  func.func @_classifier_kernel(%arg0: memref<512x32xbf16, #tpu.memory_space<vmem>>, %arg1: memref<32x32xbf16, #tpu.memory_space<vmem>>, %arg2: memref<2x512xf32, #tpu.memory_space<vmem>>, %arg3: memref<32x32xf32, #tpu.memory_space<vmem>>, %arg4: memref<1x32xf32, #tpu.memory_space<vmem>>, %arg5: memref<32x3xf32, #tpu.memory_space<vmem>>, %arg6: memref<1x3xf32, #tpu.memory_space<vmem>>, %arg7: memref<2x3xf32, #tpu.memory_space<vmem>>) attributes {dimension_semantics = [], scalar_prefetch = 0 : i64, scratch_operands = 0 : i64, tpu.core_type = #tpu.core_type<tc>} {
    %c0 = arith.constant 0 : index
    %c0_0 = arith.constant 0 : index
    %0 = vector.load %arg0[%c0, %c0_0] : memref<512x32xbf16, #tpu.memory_space<vmem>>, vector<512x32xbf16>
    %c0_1 = arith.constant 0 : index
    %c0_2 = arith.constant 0 : index
    %1 = vector.load %arg1[%c0_1, %c0_2] : memref<32x32xbf16, #tpu.memory_space<vmem>>, vector<32x32xbf16>
    %cst = arith.constant dense<0.000000e+00> : vector<512x32xf32>
    %2 = tpu.matmul %0, %1, %cst {dimension_numbers = #tpu.dot_dimension_numbers<[1], [0], [0], [1], [0, 0, 1, 1], [], []>} : vector<512x32xbf16>, vector<32x32xbf16>, vector<512x32xf32> -> vector<512x32xf32>
    %cst_3 = arith.constant 0.001953125 : f32
    %3 = vector.broadcast %cst_3 : f32 to vector<1x512xf32>
    %cst_4 = arith.constant dense<0.000000e+00> : vector<1x32xf32>
    %4 = tpu.matmul %3, %2, %cst_4 {dimension_numbers = #tpu.dot_dimension_numbers<[1], [0], [0], [1], [0, 0, 1, 1], [], []>} : vector<1x512xf32>, vector<512x32xf32>, vector<1x32xf32> -> vector<1x32xf32>
    %5 = arith.mulf %2, %2 : vector<512x32xf32>
    %cst_5 = arith.constant dense<0.000000e+00> : vector<1x32xf32>
    %6 = tpu.matmul %3, %5, %cst_5 {dimension_numbers = #tpu.dot_dimension_numbers<[1], [0], [0], [1], [0, 0, 1, 1], [], []>} : vector<1x512xf32>, vector<512x32xf32>, vector<1x32xf32> -> vector<1x32xf32>
    %7 = arith.mulf %4, %4 : vector<1x32xf32>
    %8 = arith.subf %6, %7 : vector<1x32xf32>
    %9 = vector.broadcast %4 : vector<1x32xf32> to vector<512x32xf32>
    %10 = arith.subf %2, %9 : vector<512x32xf32>
    %cst_6 = arith.constant 9.99999974E-6 : f32
    %11 = vector.broadcast %cst_6 : f32 to vector<1x32xf32>
    %12 = arith.addf %8, %11 : vector<1x32xf32>
    %13 = math.rsqrt %12 : vector<1x32xf32>
    %14 = vector.broadcast %13 : vector<1x32xf32> to vector<512x32xf32>
    %15 = arith.mulf %10, %14 : vector<512x32xf32>
    %cst_7 = arith.constant 0.000000e+00 : f32
    %16 = vector.broadcast %cst_7 : f32 to vector<512x32xf32>
    %17 = arith.maximumf %15, %16 : vector<512x32xf32>
    %c0_8 = arith.constant 0 : index
    %c0_9 = arith.constant 0 : index
    %18 = vector.load %arg2[%c0_8, %c0_9] : memref<2x512xf32, #tpu.memory_space<vmem>>, vector<2x512xf32>
    %cst_10 = arith.constant dense<0.000000e+00> : vector<2x32xf32>
    %19 = tpu.matmul %18, %17, %cst_10 {dimension_numbers = #tpu.dot_dimension_numbers<[1], [0], [0], [1], [0, 0, 1, 1], [], []>} : vector<2x512xf32>, vector<512x32xf32>, vector<2x32xf32> -> vector<2x32xf32>
    %c0_11 = arith.constant 0 : index
    %c0_12 = arith.constant 0 : index
    %20 = vector.load %arg3[%c0_11, %c0_12] : memref<32x32xf32, #tpu.memory_space<vmem>>, vector<32x32xf32>
    %cst_13 = arith.constant dense<0.000000e+00> : vector<2x32xf32>
    %21 = tpu.matmul %19, %20, %cst_13 {dimension_numbers = #tpu.dot_dimension_numbers<[1], [0], [0], [1], [0, 0, 1, 1], [], []>} : vector<2x32xf32>, vector<32x32xf32>, vector<2x32xf32> -> vector<2x32xf32>
    %c0_14 = arith.constant 0 : index
    %c0_15 = arith.constant 0 : index
    %22 = vector.load %arg4[%c0_14, %c0_15] : memref<1x32xf32, #tpu.memory_space<vmem>>, vector<1x32xf32>
    %23 = vector.broadcast %22 : vector<1x32xf32> to vector<2x32xf32>
    %24 = arith.addf %21, %23 : vector<2x32xf32>
    %cst_16 = arith.constant 0.000000e+00 : f32
    %25 = vector.broadcast %cst_16 : f32 to vector<2x32xf32>
    %26 = arith.maximumf %24, %25 : vector<2x32xf32>
    %cst_17 = arith.constant dense<0.000000e+00> : vector<32xf32>
    %27 = vector.multi_reduction <add>, %26, %cst_17 [0] : vector<2x32xf32> to vector<32xf32>
    %28 = vector.shape_cast %27 : vector<32xf32> to vector<1x32xf32>
    %cst_18 = arith.constant 2.000000e+00 : f32
    %29 = vector.broadcast %cst_18 : f32 to vector<1x32xf32>
    %30 = arith.divf %28, %29 : vector<1x32xf32>
    %31 = arith.mulf %26, %26 : vector<2x32xf32>
    %cst_19 = arith.constant dense<0.000000e+00> : vector<32xf32>
    %32 = vector.multi_reduction <add>, %31, %cst_19 [0] : vector<2x32xf32> to vector<32xf32>
    %33 = vector.shape_cast %32 : vector<32xf32> to vector<1x32xf32>
    %cst_20 = arith.constant 2.000000e+00 : f32
    %34 = vector.broadcast %cst_20 : f32 to vector<1x32xf32>
    %35 = arith.divf %33, %34 : vector<1x32xf32>
    %36 = arith.mulf %30, %30 : vector<1x32xf32>
    %37 = arith.subf %35, %36 : vector<1x32xf32>
    %38 = vector.broadcast %30 : vector<1x32xf32> to vector<2x32xf32>
    %39 = arith.subf %26, %38 : vector<2x32xf32>
    %cst_21 = arith.constant 9.99999974E-6 : f32
    %40 = vector.broadcast %cst_21 : f32 to vector<1x32xf32>
    %41 = arith.addf %37, %40 : vector<1x32xf32>
    %42 = math.rsqrt %41 : vector<1x32xf32>
    %43 = vector.broadcast %42 : vector<1x32xf32> to vector<2x32xf32>
    %44 = arith.mulf %39, %43 : vector<2x32xf32>
    %c0_22 = arith.constant 0 : index
    %c0_23 = arith.constant 0 : index
    %45 = vector.load %arg5[%c0_22, %c0_23] : memref<32x3xf32, #tpu.memory_space<vmem>>, vector<32x3xf32>
    %cst_24 = arith.constant dense<0.000000e+00> : vector<2x3xf32>
    %46 = tpu.matmul %44, %45, %cst_24 {dimension_numbers = #tpu.dot_dimension_numbers<[1], [0], [0], [1], [0, 0, 1, 1], [], []>} : vector<2x32xf32>, vector<32x3xf32>, vector<2x3xf32> -> vector<2x3xf32>
    %c0_25 = arith.constant 0 : index
    %c0_26 = arith.constant 0 : index
    %47 = vector.load %arg6[%c0_25, %c0_26] : memref<1x3xf32, #tpu.memory_space<vmem>>, vector<1x3xf32>
    %48 = vector.broadcast %47 : vector<1x3xf32> to vector<2x3xf32>
    %49 = arith.addf %46, %48 : vector<2x3xf32>
    %c0_27 = arith.constant 0 : index
    %c0_28 = arith.constant 0 : index
    %50 = vector.load %arg7[%c0_27, %c0_28] : memref<2x3xf32, #tpu.memory_space<vmem>>, vector<2x3xf32>
    tpu.vector_store %arg7[%c0_27, %c0_28], %49 {strides = array<i32>} : memref<2x3xf32, #tpu.memory_space<vmem>>, vector<2x3xf32>,
    return
  }
}

</mosaic_0001>

<llo_original>
// kernel: classifier_forward.1
$region0: #{classifier_forward.1}
  #allocation0 [shape = 'u32[]', space=smem, size = 0x4, offset = 0x4, fixed_abs, tag = 'smem constant byte address 0x4 - core index']
  #allocation1 [shape = 'u32[144,128]{1,0:T(1,128)}', space=vmem, size = 0x12000, scoped, tag = 'internal scratch']
  %s0 = inlined_call_operand.vmem [shape: bf16[512,32], index: 0, kind: input, shape index: {}]
  %s1 = inlined_call_operand.vmem [shape: bf16[32,32], index: 1, kind: input, shape index: {}]
  %s2 = inlined_call_operand.vmem [shape: f32[2,512], index: 2, kind: input, shape index: {}]
  %s3 = inlined_call_operand.vmem [shape: f32[32,32], index: 3, kind: input, shape index: {}]
  %s4 = inlined_call_operand.vmem [shape: f32[1,32], index: 4, kind: input, shape index: {}]
  %s5 = inlined_call_operand.vmem [shape: f32[32,3], index: 5, kind: input, shape index: {}]
  %s6 = inlined_call_operand.vmem [shape: f32[1,3], index: 6, kind: input, shape index: {}]
  %s7 = inlined_call_operand.hbm [shape: f32[2,3], index: 7, kind: output, shape index: {}]
  %s8 = sld [smem:[#allocation0]]
  $region38: #{classifier_forward.1} parent=0
    _
  %s10 = ssub.s32 1, %s8
  %s11 = scalar_select 0, %s10, %s8
  $region1: #{classifier_forward.1} parent=0
    #allocation2 [shape = 'u8[1024]{0}', space=vmem, size = 0x400, scoped, tag = 'output window, operand 0, single buffered']
    #allocation3 [shape = 's32[1]{0}', space=sflag, size = 0x4, scoped, tag = 'scoped memory for classifier_forward.1']
    %12 = vsyncpa [#allocation3], 0
    // Predicated region
    $region2: #{classifier_forward.1} parent=1 // pred_check
      _
    $region3: #{classifier_forward.1} parent=1 // pred_check_branch
      %14 = sbr.rel (0) target = $region5
    $region4: #{classifier_forward.1} parent=1 // pred_region
      _
    $region5: #{classifier_forward.1} parent=1 // pred_fallthru
      _
    // Predicated region
    $region6: #{classifier_forward.1} parent=1 // pred_check
      _
    $region7: #{classifier_forward.1} parent=1 // pred_check_branch
      %16 = sbr.rel (0) target = $region9
    $region8: #{classifier_forward.1} parent=1 // pred_region
      _
    $region9: #{classifier_forward.1} parent=1 // pred_fallthru
      _
    // Predicated region
    $region10: #{classifier_forward.1} parent=1 // pred_check
      _
    $region11: #{classifier_forward.1} parent=1 // pred_check_branch
      %18 = sbr.rel (0) target = $region13
    $region12: #{classifier_forward.1} parent=1 // pred_region
      _
    $region13: #{classifier_forward.1} parent=1 // pred_fallthru
      _
    // Predicated region
    $region14: #{classifier_forward.1} parent=1 // pred_check
      _
    $region15: #{classifier_forward.1} parent=1 // pred_check_branch
      %20 = sbr.rel (0) target = $region17
    $region16: #{classifier_forward.1} parent=1 // pred_region
      _
    $region17: #{classifier_forward.1} parent=1 // pred_fallthru
      _
    // Predicated region
    $region18: #{classifier_forward.1} parent=1 // pred_check
      _
    $region19: #{classifier_forward.1} parent=1 // pred_check_branch
      %22 = sbr.rel (0) target = $region21
    $region20: #{classifier_forward.1} parent=1 // pred_region
      _
    $region21: #{classifier_forward.1} parent=1 // pred_fallthru
      _
    // Predicated region
    $region22: #{classifier_forward.1} parent=1 // pred_check
      _
    $region23: #{classifier_forward.1} parent=1 // pred_check_branch
      %24 = sbr.rel (0) target = $region25
    $region24: #{classifier_forward.1} parent=1 // pred_region
      _
    $region25: #{classifier_forward.1} parent=1 // pred_fallthru
      _
    // Predicated region
    $region26: #{classifier_forward.1} parent=1 // pred_check
      _
    $region27: #{classifier_forward.1} parent=1 // pred_check_branch
      %26 = sbr.rel (0) target = $region29
    $region28: #{classifier_forward.1} parent=1 // pred_region
      _
    $region29: #{classifier_forward.1} parent=1 // pred_fallthru
      _
    %v28 = vld [vmem:[%s0] sm:$0xf]
    %v29 = vld [vmem:[%s0 + $0x4] sm:$0xf]
    %v30 = vld [vmem:[%s0 + $0x8] sm:$0xf]
    %v31 = vld [vmem:[%s0 + $0xc] sm:$0xf]
    %v32 = vld [vmem:[%s0 + $0x10] sm:$0xf]
    %v33 = vld [vmem:[%s0 + $0x14] sm:$0xf]
    %v34 = vld [vmem:[%s0 + $0x18] sm:$0xf]
    %v35 = vld [vmem:[%s0 + $0x1c] sm:$0xf]
    %v36 = vld [vmem:[%s0 + $0x20] sm:$0xf]
    %v37 = vld [vmem:[%s0 + $0x24] sm:$0xf]
    %v38 = vld [vmem:[%s0 + $0x28] sm:$0xf]
    %v39 = vld [vmem:[%s0 + $0x2c] sm:$0xf]
    %v40 = vld [vmem:[%s0 + $0x30] sm:$0xf]
    %v41 = vld [vmem:[%s0 + $0x34] sm:$0xf]
    %v42 = vld [vmem:[%s0 + $0x38] sm:$0xf]
    %v43 = vld [vmem:[%s0 + $0x3c] sm:$0xf]
    %v44 = vld [vmem:[%s0 + $0x40] sm:$0xf]
    %v45 = vld [vmem:[%s0 + $0x44] sm:$0xf]
    %v46 = vld [vmem:[%s0 + $0x48] sm:$0xf]
    %v47 = vld [vmem:[%s0 + $0x4c] sm:$0xf]
    %v48 = vld [vmem:[%s0 + $0x50] sm:$0xf]
    %v49 = vld [vmem:[%s0 + $0x54] sm:$0xf]
    %v50 = vld [vmem:[%s0 + $0x58] sm:$0xf]
    %v51 = vld [vmem:[%s0 + $0x5c] sm:$0xf]
    %v52 = vld [vmem:[%s0 + $0x60] sm:$0xf]
    %v53 = vld [vmem:[%s0 + $0x64] sm:$0xf]
    %v54 = vld [vmem:[%s0 + $0x68] sm:$0xf]
    %v55 = vld [vmem:[%s0 + $0x6c] sm:$0xf]
    %v56 = vld [vmem:[%s0 + $0x70] sm:$0xf]
    %v57 = vld [vmem:[%s0 + $0x74] sm:$0xf]
    %v58 = vld [vmem:[%s0 + $0x78] sm:$0xf]
    %v59 = vld [vmem:[%s0 + $0x7c] sm:$0xf]
    %v60 = vld [vmem:[%s0 + $0x80] sm:$0xf]
    %v61 = vld [vmem:[%s0 + $0x84] sm:$0xf]
    %v62 = vld [vmem:[%s0 + $0x88] sm:$0xf]
    %v63 = vld [vmem:[%s0 + $0x8c] sm:$0xf]
    %v64 = vld [vmem:[%s0 + $0x90] sm:$0xf]
    %v65 = vld [vmem:[%s0 + $0x94] sm:$0xf]
    %v66 = vld [vmem:[%s0 + $0x98] sm:$0xf]
    %v67 = vld [vmem:[%s0 + $0x9c] sm:$0xf]
    %v68 = vld [vmem:[%s0 + $0xa0] sm:$0xf]
    %v69 = vld [vmem:[%s0 + $0xa4] sm:$0xf]
    %v70 = vld [vmem:[%s0 + $0xa8] sm:$0xf]
    %v71 = vld [vmem:[%s0 + $0xac] sm:$0xf]
    %v72 = vld [vmem:[%s0 + $0xb0] sm:$0xf]
    %v73 = vld [vmem:[%s0 + $0xb4] sm:$0xf]
    %v74 = vld [vmem:[%s0 + $0xb8] sm:$0xf]
    %v75 = vld [vmem:[%s0 + $0xbc] sm:$0xf]
    %v76 = vld [vmem:[%s0 + $0xc0] sm:$0xf]
    %v77 = vld [vmem:[%s0 + $0xc4] sm:$0xf]
    %v78 = vld [vmem:[%s0 + $0xc8] sm:$0xf]
    %v79 = vld [vmem:[%s0 + $0xcc] sm:$0xf]
    %v80 = vld [vmem:[%s0 + $0xd0] sm:$0xf]
    %v81 = vld [vmem:[%s0 + $0xd4] sm:$0xf]
    %v82 = vld [vmem:[%s0 + $0xd8] sm:$0xf]
    %v83 = vld [vmem:[%s0 + $0xdc] sm:$0xf]
    %v84 = vld [vmem:[%s0 + $0xe0] sm:$0xf]
    %v85 = vld [vmem:[%s0 + $0xe4] sm:$0xf]
    %v86 = vld [vmem:[%s0 + $0xe8] sm:$0xf]
    %v87 = vld [vmem:[%s0 + $0xec] sm:$0xf]
    %v88 = vld [vmem:[%s0 + $0xf0] sm:$0xf]
    %v89 = vld [vmem:[%s0 + $0xf4] sm:$0xf]
    %v90 = vld [vmem:[%s0 + $0xf8] sm:$0xf]
    %v91 = vld [vmem:[%s0 + $0xfc] sm:$0xf]
    %v92 = vld [vmem:[%s1] sm:$0xf]
    %v93 = vld [vmem:[%s1 + $0x4] sm:$0xf]
    %v94 = vld [vmem:[%s1 + $0x8] sm:$0xf]
    %v95 = vld [vmem:[%s1 + $0xc] sm:$0xf]
    %v160 = vunpack.c.l.b16 %v28
    %v161 = vunpack.c.l.b16 %v29
    %v162 = vunpack.c.l.b16 %v30
    %v163 = vunpack.c.l.b16 %v31
    %v164 = vunpack.c.l.b16 %v32
    %v165 = vunpack.c.l.b16 %v33
    %v166 = vunpack.c.l.b16 %v34
    %v167 = vunpack.c.l.b16 %v35
    %v168 = vunpack.c.l.b16 %v36
    %v169 = vunpack.c.l.b16 %v37
    %v170 = vunpack.c.l.b16 %v38
    %v171 = vunpack.c.l.b16 %v39
    %v172 = vunpack.c.l.b16 %v40
    %v173 = vunpack.c.l.b16 %v41
    %v174 = vunpack.c.l.b16 %v42
    %v175 = vunpack.c.l.b16 %v43
    %v176 = vunpack.c.l.b16 %v44
    %v177 = vunpack.c.l.b16 %v45
    %v178 = vunpack.c.l.b16 %v46
    %v179 = vunpack.c.l.b16 %v47
    %v180 = vunpack.c.l.b16 %v48
    %v181 = vunpack.c.l.b16 %v49
    %v182 = vunpack.c.l.b16 %v50
    %v183 = vunpack.c.l.b16 %v51
    %v184 = vunpack.c.l.b16 %v52
    %v185 = vunpack.c.l.b16 %v53
    %v186 = vunpack.c.l.b16 %v54
    %v187 = vunpack.c.l.b16 %v55
    %v188 = vunpack.c.l.b16 %v56
    %v189 = vunpack.c.l.b16 %v57
    %v190 = vunpack.c.l.b16 %v58
    %v191 = vunpack.c.l.b16 %v59
    %v192 = vunpack.c.l.b16 %v60
    %v193 = vunpack.c.l.b16 %v61
    %v194 = vunpack.c.l.b16 %v62
    %v195 = vunpack.c.l.b16 %v63
    %v196 = vunpack.c.l.b16 %v64
    %v197 = vunpack.c.l.b16 %v65
    %v198 = vunpack.c.l.b16 %v66
    %v199 = vunpack.c.l.b16 %v67
    %v200 = vunpack.c.l.b16 %v68
    %v201 = vunpack.c.l.b16 %v69
    %v202 = vunpack.c.l.b16 %v70
    %v203 = vunpack.c.l.b16 %v71
    %v204 = vunpack.c.l.b16 %v72
    %v205 = vunpack.c.l.b16 %v73
    %v206 = vunpack.c.l.b16 %v74
    %v207 = vunpack.c.l.b16 %v75
    %v208 = vunpack.c.l.b16 %v76
    %v209 = vunpack.c.l.b16 %v77
    %v210 = vunpack.c.l.b16 %v78
    %v211 = vunpack.c.l.b16 %v79
    %v212 = vunpack.c.l.b16 %v80
    %v213 = vunpack.c.l.b16 %v81
    %v214 = vunpack.c.l.b16 %v82
    %v215 = vunpack.c.l.b16 %v83
    %v216 = vunpack.c.l.b16 %v84
    %v217 = vunpack.c.l.b16 %v85
    %v218 = vunpack.c.l.b16 %v86
    %v219 = vunpack.c.l.b16 %v87
    %v220 = vunpack.c.l.b16 %v88
    %v221 = vunpack.c.l.b16 %v89
    %v222 = vunpack.c.l.b16 %v90
    %v223 = vunpack.c.l.b16 %v91
    %v224 = vpack.c.b16 %v161, %v160
    %v225 = vpack.c.b16 %v163, %v162
    %v226 = vpack.c.b16 %v165, %v164
    %v227 = vpack.c.b16 %v167, %v166
    %v228 = vpack.c.b16 %v169, %v168
    %v229 = vpack.c.b16 %v171, %v170
    %v230 = vpack.c.b16 %v173, %v172
    %v231 = vpack.c.b16 %v175, %v174
    %v232 = vpack.c.b16 %v177, %v176
    %v233 = vpack.c.b16 %v179, %v178
    %v234 = vpack.c.b16 %v181, %v180
    %v235 = vpack.c.b16 %v183, %v182
    %v236 = vpack.c.b16 %v185, %v184
    %v237 = vpack.c.b16 %v187, %v186
    %v238 = vpack.c.b16 %v189, %v188
    %v239 = vpack.c.b16 %v191, %v190
    %v240 = vpack.c.b16 %v193, %v192
    %v241 = vpack.c.b16 %v195, %v194
    %v242 = vpack.c.b16 %v197, %v196
    %v243 = vpack.c.b16 %v199, %v198
    %v244 = vpack.c.b16 %v201, %v200
    %v245 = vpack.c.b16 %v203, %v202
    %v246 = vpack.c.b16 %v205, %v204
    %v247 = vpack.c.b16 %v207, %v206
    %v248 = vpack.c.b16 %v209, %v208
    %v249 = vpack.c.b16 %v211, %v210
    %v250 = vpack.c.b16 %v213, %v212
    %v251 = vpack.c.b16 %v215, %v214
    %v252 = vpack.c.b16 %v217, %v216
    %v253 = vpack.c.b16 %v219, %v218
    %v254 = vpack.c.b16 %v221, %v220
    %v255 = vpack.c.b16 %v223, %v222
    %v260 = vunpack.c.l.b16 %v92
    %v261 = vunpack.c.l.b16 %v93
    %v262 = vunpack.c.l.b16 %v94
    %v263 = vunpack.c.l.b16 %v95
    %v264 = vpack.c.b16 %v261, %v260
    %v265 = vpack.c.b16 %v263, %v262
    %vm268 = vcmask 261120
    %v270 = vsel %vm268, %v224, 0
    %v273 = vsel %vm268, %v225, 0
    %v276 = vsel %vm268, %v226, 0
    %v279 = vsel %vm268, %v227, 0
    %v282 = vsel %vm268, %v228, 0
    %v285 = vsel %vm268, %v229, 0
    %v288 = vsel %vm268, %v230, 0
    %v291 = vsel %vm268, %v231, 0
    %v294 = vsel %vm268, %v232, 0
    %v297 = vsel %vm268, %v233, 0
    %v300 = vsel %vm268, %v234, 0
    %v303 = vsel %vm268, %v235, 0
    %v306 = vsel %vm268, %v236, 0
    %v309 = vsel %vm268, %v237, 0
    %v312 = vsel %vm268, %v238, 0
    %v315 = vsel %vm268, %v239, 0
    %v318 = vsel %vm268, %v240, 0
    %v321 = vsel %vm268, %v241, 0
    %v324 = vsel %vm268, %v242, 0
    %v327 = vsel %vm268, %v243, 0
    %v330 = vsel %vm268, %v244, 0
    %v333 = vsel %vm268, %v245, 0
    %v336 = vsel %vm268, %v246, 0
    %v339 = vsel %vm268, %v247, 0
    %v342 = vsel %vm268, %v248, 0
    %v345 = vsel %vm268, %v249, 0
    %v348 = vsel %vm268, %v250, 0
    %v351 = vsel %vm268, %v251, 0
    %v354 = vsel %vm268, %v252, 0
    %v357 = vsel %vm268, %v253, 0
    %v360 = vsel %vm268, %v254, 0
    %v363 = vsel %vm268, %v255, 0
    %365 = vmatprep.subr.bf16.mxu0 0
    %366 = vmatpush1.bf16.msra.mxu0 %v264
    %367 = vmatprep.subr.bf16.mxu0 0
    %368 = vmatpush1.bf16.msra.mxu0 %v265
    %369 = vmatprep.subr.bf16.mxu0 0
    %370 = vmatpush1.bf16.msra.mxu0 0
    %371 = vmatprep.subr.bf16.mxu0 0
    %372 = vmatpush1.bf16.msra.mxu0 0
    %373 = vmatprep.subr.bf16.mxu0 0
    %374 = vmatpush1.bf16.msra.mxu0 0
    %375 = vmatprep.subr.bf16.mxu0 0
    %376 = vmatpush1.bf16.msra.mxu0 0
    %377 = vmatprep.subr.bf16.mxu0 0
    %378 = vmatpush1.bf16.msra.mxu0 0
    %379 = vmatprep.subr.bf16.mxu0 0
    %380 = vmatpush1.bf16.msra.mxu0 0
    %381 = vmatprep.subr.bf16.mxu0 0
    %382 = vmatpush1.bf16.msra.mxu0 0
    %383 = vmatprep.subr.bf16.mxu0 0
    %384 = vmatpush1.bf16.msra.mxu0 0
    %385 = vmatprep.subr.bf16.mxu0 0
    %386 = vmatpush1.bf16.msra.mxu0 0
    %387 = vmatprep.subr.bf16.mxu0 0
    %388 = vmatpush1.bf16.msra.mxu0 0
    %389 = vmatprep.subr.bf16.mxu0 0
    %390 = vmatpush1.bf16.msra.mxu0 0
    %391 = vmatprep.subr.bf16.mxu0 0
    %392 = vmatpush1.bf16.msra.mxu0 0
    %393 = vmatprep.subr.bf16.mxu0 0
    %394 = vmatpush1.bf16.msra.mxu0 0
    %395 = vmatprep.subr.bf16.mxu0 0
    %396 = vmatpush1.bf16.msra.mxu0 0
    %397 = vmatprep.mubr.bf16.mxu0 0
    %398 = vmatmul.mubr.bf16.gmra.mrb[0].mxu0 %v270
    %v399 = vpop.f32.mrb[0].mxu0
    %v400 = vadd.f32 0.0, %v399
    %v401 = vpop.f32.mrb[0].mxu0
    %v402 = vpop.f32.mrb[0].mxu0
    %v403 = vadd.f32 0.0, %v402
    %v404 = vpop.f32.mrb[0].mxu0
    %405 = vmatprep.mubr.bf16.mxu0 0
    %406 = vmatmul.mubr.bf16.gmra.mrb[0].mxu0 %v273
    %v407 = vpop.f32.mrb[0].mxu0
    %v408 = vadd.f32 0.0, %v407
    %v409 = vpop.f32.mrb[0].mxu0
    %v410 = vpop.f32.mrb[0].mxu0
    %v411 = vadd.f32 0.0, %v410
    %v412 = vpop.f32.mrb[0].mxu0
    %413 = vmatprep.mubr.bf16.mxu0 0
    %414 = vmatmul.mubr.bf16.gmra.mrb[0].mxu0 %v276
    %v415 = vpop.f32.mrb[0].mxu0
    %v416 = vadd.f32 0.0, %v415
    %v417 = vpop.f32.mrb[0].mxu0
    %v418 = vpop.f32.mrb[0].mxu0
    %v419 = vadd.f32 0.0, %v418
    %v420 = vpop.f32.mrb[0].mxu0
    %421 = vmatprep.mubr.bf16.mxu0 0
    %422 = vmatmul.mubr.bf16.gmra.mrb[0].mxu0 %v279
    %v423 = vpop.f32.mrb[0].mxu0
    %v424 = vadd.f32 0.0, %v423
    %v425 = vpop.f32.mrb[0].mxu0
    %v426 = vpop.f32.mrb[0].mxu0
    %v427 = vadd.f32 0.0, %v426
    %v428 = vpop.f32.mrb[0].mxu0
    %429 = vmatprep.mubr.bf16.mxu0 0
    %430 = vmatmul.mubr.bf16.gmra.mrb[0].mxu0 %v282
    %v431 = vpop.f32.mrb[0].mxu0
    %v432 = vadd.f32 0.0, %v431
    %v433 = vpop.f32.mrb[0].mxu0
    %v434 = vpop.f32.mrb[0].mxu0
    %v435 = vadd.f32 0.0, %v434
    %v436 = vpop.f32.mrb[0].mxu0
    %437 = vmatprep.mubr.bf16.mxu0 0
    %438 = vmatmul.mubr.bf16.gmra.mrb[0].mxu0 %v285
    %v439 = vpop.f32.mrb[0].mxu0
    %v440 = vadd.f32 0.0, %v439
    %v441 = vpop.f32.mrb[0].mxu0
    %v442 = vpop.f32.mrb[0].mxu0
    %v443 = vadd.f32 0.0, %v442
    %v444 = vpop.f32.mrb[0].mxu0
    %445 = vmatprep.mubr.bf16.mxu0 0
    %446 = vmatmul.mubr.bf16.gmra.mrb[0].mxu0 %v288
    %v447 = vpop.f32.mrb[0].mxu0
    %v448 = vadd.f32 0.0, %v447
    %v449 = vpop.f32.mrb[0].mxu0
    %v450 = vpop.f32.mrb[0].mxu0
    %v451 = vadd.f32 0.0, %v450
    %v452 = vpop.f32.mrb[0].mxu0
    %453 = vmatprep.mubr.bf16.mxu0 0
    %454 = vmatmul.mubr.bf16.gmra.mrb[0].mxu0 %v291
    %v455 = vpop.f32.mrb[0].mxu0
    %v456 = vadd.f32 0.0, %v455
    %v457 = vpop.f32.mrb[0].mxu0
    %v458 = vpop.f32.mrb[0].mxu0
    %v459 = vadd.f32 0.0, %v458
    %v460 = vpop.f32.mrb[0].mxu0
    %461 = vmatprep.mubr.bf16.mxu0 0
    %462 = vmatmul.mubr.bf16.gmra.mrb[0].mxu0 %v294
    %v463 = vpop.f32.mrb[0].mxu0
    %v464 = vadd.f32 0.0, %v463
    %v465 = vpop.f32.mrb[0].mxu0
    %v466 = vpop.f32.mrb[0].mxu0
    %v467 = vadd.f32 0.0, %v466
    %v468 = vpop.f32.mrb[0].mxu0
    %469 = vmatprep.mubr.bf16.mxu0 0
    %470 = vmatmul.mubr.bf16.gmra.mrb[0].mxu0 %v297
    %v471 = vpop.f32.mrb[0].mxu0
    %v472 = vadd.f32 0.0, %v471
    %v473 = vpop.f32.mrb[0].mxu0
    %v474 = vpop.f32.mrb[0].mxu0
    %v475 = vadd.f32 0.0, %v474
    %v476 = vpop.f32.mrb[0].mxu0
    %477 = vmatprep.mubr.bf16.mxu0 0
    %478 = vmatmul.mubr.bf16.gmra.mrb[0].mxu0 %v300
    %v479 = vpop.f32.mrb[0].mxu0
    %v480 = vadd.f32 0.0, %v479
    %v481 = vpop.f32.mrb[0].mxu0
    %v482 = vpop.f32.mrb[0].mxu0
    %v483 = vadd.f32 0.0, %v482
    %v484 = vpop.f32.mrb[0].mxu0
    %485 = vmatprep.mubr.bf16.mxu0 0
    %486 = vmatmul.mubr.bf16.gmra.mrb[0].mxu0 %v303
    %v487 = vpop.f32.mrb[0].mxu0
    %v488 = vadd.f32 0.0, %v487
    %v489 = vpop.f32.mrb[0].mxu0
    %v490 = vpop.f32.mrb[0].mxu0
    %v491 = vadd.f32 0.0, %v490
    %v492 = vpop.f32.mrb[0].mxu0
    %493 = vmatprep.mubr.bf16.mxu0 0
    %494 = vmatmul.mubr.bf16.gmra.mrb[0].mxu0 %v306
    %v495 = vpop.f32.mrb[0].mxu0
    %v496 = vadd.f32 0.0, %v495
    %v497 = vpop.f32.mrb[0].mxu0
    %v498 = vpop.f32.mrb[0].mxu0
    %v499 = vadd.f32 0.0, %v498
    %v500 = vpop.f32.mrb[0].mxu0
    %501 = vmatprep.mubr.bf16.mxu0 0
    %502 = vmatmul.mubr.bf16.gmra.mrb[0].mxu0 %v309
    %v503 = vpop.f32.mrb[0].mxu0
    %v504 = vadd.f32 0.0, %v503
    %v505 = vpop.f32.mrb[0].mxu0
    %v506 = vpop.f32.mrb[0].mxu0
    %v507 = vadd.f32 0.0, %v506
    %v508 = vpop.f32.mrb[0].mxu0
    %509 = vmatprep.mubr.bf16.mxu0 0
    %510 = vmatmul.mubr.bf16.gmra.mrb[0].mxu0 %v312
    %v511 = vpop.f32.mrb[0].mxu0
    %v512 = vadd.f32 0.0, %v511
    %v513 = vpop.f32.mrb[0].mxu0
    %v514 = vpop.f32.mrb[0].mxu0
    %v515 = vadd.f32 0.0, %v514
    %v516 = vpop.f32.mrb[0].mxu0
    %517 = vmatprep.mubr.bf16.mxu0 0
    %518 = vmatmul.mubr.bf16.gmra.mrb[0].mxu0 %v315
    %v519 = vpop.f32.mrb[0].mxu0
    %v520 = vadd.f32 0.0, %v519
    %v521 = vpop.f32.mrb[0].mxu0
    %v522 = vpop.f32.mrb[0].mxu0
    %v523 = vadd.f32 0.0, %v522
    %v524 = vpop.f32.mrb[0].mxu0
    %525 = vmatprep.mubr.bf16.mxu0 0
    %526 = vmatmul.mubr.bf16.gmra.mrb[0].mxu0 %v318
    %v527 = vpop.f32.mrb[0].mxu0
    %v528 = vadd.f32 0.0, %v527
    %v529 = vpop.f32.mrb[0].mxu0
    %v530 = vpop.f32.mrb[0].mxu0
    %v531 = vadd.f32 0.0, %v530
    %v532 = vpop.f32.mrb[0].mxu0
    %533 = vmatprep.mubr.bf16.mxu0 0
    %534 = vmatmul.mubr.bf16.gmra.mrb[0].mxu0 %v321
    %v535 = vpop.f32.mrb[0].mxu0
    %v536 = vadd.f32 0.0, %v535
    %v537 = vpop.f32.mrb[0].mxu0
    %v538 = vpop.f32.mrb[0].mxu0
    %v539 = vadd.f32 0.0, %v538
    %v540 = vpop.f32.mrb[0].mxu0
    %541 = vmatprep.mubr.bf16.mxu0 0
    %542 = vmatmul.mubr.bf16.gmra.mrb[0].mxu0 %v324
    %v543 = vpop.f32.mrb[0].mxu0
    %v544 = vadd.f32 0.0, %v543
    %v545 = vpop.f32.mrb[0].mxu0
    %v546 = vpop.f32.mrb[0].mxu0
    %v547 = vadd.f32 0.0, %v546
    %v548 = vpop.f32.mrb[0].mxu0
    %549 = vmatprep.mubr.bf16.mxu0 0
    %550 = vmatmul.mubr.bf16.gmra.mrb[0].mxu0 %v327
    %v551 = vpop.f32.mrb[0].mxu0
    %v552 = vadd.f32 0.0, %v551
    %v553 = vpop.f32.mrb[0].mxu0
    %v554 = vpop.f32.mrb[0].mxu0
    %v555 = vadd.f32 0.0, %v554
    %v556 = vpop.f32.mrb[0].mxu0
    %557 = vmatprep.mubr.bf16.mxu0 0
    %558 = vmatmul.mubr.bf16.gmra.mrb[0].mxu0 %v330
    %v559 = vpop.f32.mrb[0].mxu0
    %v560 = vadd.f32 0.0, %v559
    %v561 = vpop.f32.mrb[0].mxu0
    %v562 = vpop.f32.mrb[0].mxu0
    %v563 = vadd.f32 0.0, %v562
    %v564 = vpop.f32.mrb[0].mxu0
    %565 = vmatprep.mubr.bf16.mxu0 0
    %566 = vmatmul.mubr.bf16.gmra.mrb[0].mxu0 %v333
    %v567 = vpop.f32.mrb[0].mxu0
    %v568 = vadd.f32 0.0, %v567
    %v569 = vpop.f32.mrb[0].mxu0
    %v570 = vpop.f32.mrb[0].mxu0
    %v571 = vadd.f32 0.0, %v570
    %v572 = vpop.f32.mrb[0].mxu0
    %573 = vmatprep.mubr.bf16.mxu0 0
    %574 = vmatmul.mubr.bf16.gmra.mrb[0].mxu0 %v336
    %v575 = vpop.f32.mrb[0].mxu0
    %v576 = vadd.f32 0.0, %v575
    %v577 = vpop.f32.mrb[0].mxu0
    %v578 = vpop.f32.mrb[0].mxu0
    %v579 = vadd.f32 0.0, %v578
    %v580 = vpop.f32.mrb[0].mxu0
    %581 = vmatprep.mubr.bf16.mxu0 0
    %582 = vmatmul.mubr.bf16.gmra.mrb[0].mxu0 %v339
    %v583 = vpop.f32.mrb[0].mxu0
    %v584 = vadd.f32 0.0, %v583
    %v585 = vpop.f32.mrb[0].mxu0
    %v586 = vpop.f32.mrb[0].mxu0
    %v587 = vadd.f32 0.0, %v586
    %v588 = vpop.f32.mrb[0].mxu0
    %589 = vmatprep.mubr.bf16.mxu0 0
    %590 = vmatmul.mubr.bf16.gmra.mrb[0].mxu0 %v342
    %v591 = vpop.f32.mrb[0].mxu0
    %v592 = vadd.f32 0.0, %v591
    %v593 = vpop.f32.mrb[0].mxu0
    %v594 = vpop.f32.mrb[0].mxu0
    %v595 = vadd.f32 0.0, %v594
    %v596 = vpop.f32.mrb[0].mxu0
    %597 = vmatprep.mubr.bf16.mxu0 0
    %598 = vmatmul.mubr.bf16.gmra.mrb[0].mxu0 %v345
    %v599 = vpop.f32.mrb[0].mxu0
    %v600 = vadd.f32 0.0, %v599
    %v601 = vpop.f32.mrb[0].mxu0
    %v602 = vpop.f32.mrb[0].mxu0
    %v603 = vadd.f32 0.0, %v602
    %v604 = vpop.f32.mrb[0].mxu0
    %605 = vmatprep.mubr.bf16.mxu0 0
    %606 = vmatmul.mubr.bf16.gmra.mrb[0].mxu0 %v348
    %v607 = vpop.f32.mrb[0].mxu0
    %v608 = vadd.f32 0.0, %v607
    %v609 = vpop.f32.mrb[0].mxu0
    %v610 = vpop.f32.mrb[0].mxu0
    %v611 = vadd.f32 0.0, %v610
    %v612 = vpop.f32.mrb[0].mxu0
    %613 = vmatprep.mubr.bf16.mxu0 0
    %614 = vmatmul.mubr.bf16.gmra.mrb[0].mxu0 %v351
    %v615 = vpop.f32.mrb[0].mxu0
    %v616 = vadd.f32 0.0, %v615
    %v617 = vpop.f32.mrb[0].mxu0
    %v618 = vpop.f32.mrb[0].mxu0
    %v619 = vadd.f32 0.0, %v618
    %v620 = vpop.f32.mrb[0].mxu0
    %621 = vmatprep.mubr.bf16.mxu0 0
    %622 = vmatmul.mubr.bf16.gmra.mrb[0].mxu0 %v354
    %v623 = vpop.f32.mrb[0].mxu0
    %v624 = vadd.f32 0.0, %v623
    %v625 = vpop.f32.mrb[0].mxu0
    %v626 = vpop.f32.mrb[0].mxu0
    %v627 = vadd.f32 0.0, %v626
    %v628 = vpop.f32.mrb[0].mxu0
    %629 = vmatprep.mubr.bf16.mxu0 0
    %630 = vmatmul.mubr.bf16.gmra.mrb[0].mxu0 %v357
    %v631 = vpop.f32.mrb[0].mxu0
    %v632 = vadd.f32 0.0, %v631
    %v633 = vpop.f32.mrb[0].mxu0
    %v634 = vpop.f32.mrb[0].mxu0
    %v635 = vadd.f32 0.0, %v634
    %v636 = vpop.f32.mrb[0].mxu0
    %637 = vmatprep.mubr.bf16.mxu0 0
    %638 = vmatmul.mubr.bf16.gmra.mrb[0].mxu0 %v360
    %v639 = vpop.f32.mrb[0].mxu0
    %v640 = vadd.f32 0.0, %v639
    %v641 = vpop.f32.mrb[0].mxu0
    %v642 = vpop.f32.mrb[0].mxu0
    %v643 = vadd.f32 0.0, %v642
    %v644 = vpop.f32.mrb[0].mxu0
    %645 = vmatprep.mubr.bf16.mxu0 0
    %646 = vmatmul.mubr.bf16.gmra.mrb[0].mxu0 %v363
    %v647 = vpop.f32.mrb[0].mxu0
    %v648 = vadd.f32 0.0, %v647
    %v649 = vpop.f32.mrb[0].mxu0
    %v650 = vpop.f32.mrb[0].mxu0
    %v651 = vadd.f32 0.0, %v650
    %v652 = vpop.f32.mrb[0].mxu0
    %653 = vdwg.mxu0
    %654 = vmatprep.subr.mxu0 0.0
    %655 = vmatpush1.msra.mxu0 %v400
    %656 = vmatprep.subr.mxu0 0.0
    %657 = vmatpush1.msra.mxu0 %v403
    %658 = vmatprep.subr.mxu0 0.0
    %659 = vmatpush1.msra.mxu0 %v408
    %660 = vmatprep.subr.mxu0 0.0
    %661 = vmatpush1.msra.mxu0 %v411
    %662 = vmatprep.subr.mxu0 0.0
    %663 = vmatpush1.msra.mxu0 %v416
    %664 = vmatprep.subr.mxu0 0.0
    %665 = vmatpush1.msra.mxu0 %v419
    %666 = vmatprep.subr.mxu0 0.0
    %667 = vmatpush1.msra.mxu0 %v424
    %668 = vmatprep.subr.mxu0 0.0
    %669 = vmatpush1.msra.mxu0 %v427
    %670 = vmatprep.subr.mxu0 0.0
    %671 = vmatpush1.msra.mxu0 %v432
    %672 = vmatprep.subr.mxu0 0.0
    %673 = vmatpush1.msra.mxu0 %v435
    %674 = vmatprep.subr.mxu0 0.0
    %675 = vmatpush1.msra.mxu0 %v440
    %676 = vmatprep.subr.mxu0 0.0
    %677 = vmatpush1.msra.mxu0 %v443
    %678 = vmatprep.subr.mxu0 0.0
    %679 = vmatpush1.msra.mxu0 %v448
    %680 = vmatprep.subr.mxu0 0.0
    %681 = vmatpush1.msra.mxu0 %v451
    %682 = vmatprep.subr.mxu0 0.0
    %683 = vmatpush1.msra.mxu0 %v456
    %684 = vmatprep.subr.mxu0 0.0
    %685 = vmatpush1.msra.mxu0 %v459
    %686 = vmatprep.subr.mxu0 0.0
    %687 = vmatpush1.msra.mxu0 %v464
    %688 = vmatprep.subr.mxu0 0.0
    %689 = vmatpush1.msra.mxu0 %v467
    %690 = vmatprep.subr.mxu0 0.0
    %691 = vmatpush1.msra.mxu0 %v472
    %692 = vmatprep.subr.mxu0 0.0
    %693 = vmatpush1.msra.mxu0 %v475
    %694 = vmatprep.subr.mxu0 0.0
    %695 = vmatpush1.msra.mxu0 %v480
    %696 = vmatprep.subr.mxu0 0.0
    %697 = vmatpush1.msra.mxu0 %v483
    %698 = vmatprep.subr.mxu0 0.0
    %699 = vmatpush1.msra.mxu0 %v488
    %700 = vmatprep.subr.mxu0 0.0
    %701 = vmatpush1.msra.mxu0 %v491
    %702 = vmatprep.subr.mxu0 0.0
    %703 = vmatpush1.msra.mxu0 %v496
    %704 = vmatprep.subr.mxu0 0.0
    %705 = vmatpush1.msra.mxu0 %v499
    %706 = vmatprep.subr.mxu0 0.0
    %707 = vmatpush1.msra.mxu0 %v504
    %708 = vmatprep.subr.mxu0 0.0
    %709 = vmatpush1.msra.mxu0 %v507
    %710 = vmatprep.subr.mxu0 0.0
    %711 = vmatpush1.msra.mxu0 %v512
    %712 = vmatprep.subr.mxu0 0.0
    %713 = vmatpush1.msra.mxu0 %v515
    %714 = vmatprep.subr.mxu0 0.0
    %715 = vmatpush1.msra.mxu0 %v520
    %716 = vmatprep.subr.mxu0 0.0
    %717 = vmatpush1.msra.mxu0 %v523
    %718 = vmatprep.mubr.f32.mxu0 0.001953125
    %719 = vmatmul.mubr.f32.gmra.mrb[0].mxu0 0.001953125
    %v720 = vpop.f32.mrb[0].mxu0
    %v721 = vadd.f32 0.0, %v720
    %v722 = vpop.f32.mrb[0].mxu0
    %723 = vdwg.mxu0
    %724 = vmatprep.subr.mxu0 0.0
    %725 = vmatpush1.msra.mxu0 %v528
    %726 = vmatprep.subr.mxu0 0.0
    %727 = vmatpush1.msra.mxu0 %v531
    %728 = vmatprep.subr.mxu0 0.0
    %729 = vmatpush1.msra.mxu0 %v536
    %730 = vmatprep.subr.mxu0 0.0
    %731 = vmatpush1.msra.mxu0 %v539
    %732 = vmatprep.subr.mxu0 0.0
    %733 = vmatpush1.msra.mxu0 %v544
    %734 = vmatprep.subr.mxu0 0.0
    %735 = vmatpush1.msra.mxu0 %v547
    %736 = vmatprep.subr.mxu0 0.0
    %737 = vmatpush1.msra.mxu0 %v552
    %738 = vmatprep.subr.mxu0 0.0
    %739 = vmatpush1.msra.mxu0 %v555
    %740 = vmatprep.subr.mxu0 0.0
    %741 = vmatpush1.msra.mxu0 %v560
    %742 = vmatprep.subr.mxu0 0.0
    %743 = vmatpush1.msra.mxu0 %v563
    %744 = vmatprep.subr.mxu0 0.0
    %745 = vmatpush1.msra.mxu0 %v568
    %746 = vmatprep.subr.mxu0 0.0
    %747 = vmatpush1.msra.mxu0 %v571
    %748 = vmatprep.subr.mxu0 0.0
    %749 = vmatpush1.msra.mxu0 %v576
    %750 = vmatprep.subr.mxu0 0.0
    %751 = vmatpush1.msra.mxu0 %v579
    %752 = vmatprep.subr.mxu0 0.0
    %753 = vmatpush1.msra.mxu0 %v584
    %754 = vmatprep.subr.mxu0 0.0
    %755 = vmatpush1.msra.mxu0 %v587
    %756 = vmatprep.subr.mxu0 0.0
    %757 = vmatpush1.msra.mxu0 %v592
    %758 = vmatprep.subr.mxu0 0.0
    %759 = vmatpush1.msra.mxu0 %v595
    %760 = vmatprep.subr.mxu0 0.0
    %761 = vmatpush1.msra.mxu0 %v600
    %762 = vmatprep.subr.mxu0 0.0
    %763 = vmatpush1.msra.mxu0 %v603
    %764 = vmatprep.subr.mxu0 0.0
    %765 = vmatpush1.msra.mxu0 %v608
    %766 = vmatprep.subr.mxu0 0.0
    %767 = vmatpush1.msra.mxu0 %v611
    %768 = vmatprep.subr.mxu0 0.0
    %769 = vmatpush1.msra.mxu0 %v616
    %770 = vmatprep.subr.mxu0 0.0
    %771 = vmatpush1.msra.mxu0 %v619
    %772 = vmatprep.subr.mxu0 0.0
    %773 = vmatpush1.msra.mxu0 %v624
    %774 = vmatprep.subr.mxu0 0.0
    %775 = vmatpush1.msra.mxu0 %v627
    %776 = vmatprep.subr.mxu0 0.0
    %777 = vmatpush1.msra.mxu0 %v632
    %778 = vmatprep.subr.mxu0 0.0
    %779 = vmatpush1.msra.mxu0 %v635
    %780 = vmatprep.subr.mxu0 0.0
    %781 = vmatpush1.msra.mxu0 %v640
    %782 = vmatprep.subr.mxu0 0.0
    %783 = vmatpush1.msra.mxu0 %v643
    %784 = vmatprep.subr.mxu0 0.0
    %785 = vmatpush1.msra.mxu0 %v648
    %786 = vmatprep.subr.mxu0 0.0
    %787 = vmatpush1.msra.mxu0 %v651
    %788 = vmatprep.mubr.f32.mxu0 0.001953125
    %789 = vmatmul.mubr.f32.gmra.mrb[0].mxu0 0.001953125
    %v790 = vpop.f32.mrb[0].mxu0
    %v791 = vadd.f32 %v721, %v790
    %v792 = vpop.f32.mrb[0].mxu0
    %793 = vdwg.mxu0
    %v794 = vmul.f32 %v400, %v400
    %v795 = vmul.f32 %v403, %v403
    %v796 = vmul.f32 %v408, %v408
    %v797 = vmul.f32 %v411, %v411
    %v798 = vmul.f32 %v416, %v416
    %v799 = vmul.f32 %v419, %v419
    %v800 = vmul.f32 %v424, %v424
    %v801 = vmul.f32 %v427, %v427
    %v802 = vmul.f32 %v432, %v432
    %v803 = vmul.f32 %v435, %v435
    %v804 = vmul.f32 %v440, %v440
    %v805 = vmul.f32 %v443, %v443
    %v806 = vmul.f32 %v448, %v448
    %v807 = vmul.f32 %v451, %v451
    %v808 = vmul.f32 %v456, %v456
    %v809 = vmul.f32 %v459, %v459
    %v810 = vmul.f32 %v464, %v464
    %v811 = vmul.f32 %v467, %v467
    %v812 = vmul.f32 %v472, %v472
    %v813 = vmul.f32 %v475, %v475
    %v814 = vmul.f32 %v480, %v480
    %v815 = vmul.f32 %v483, %v483
    %v816 = vmul.f32 %v488, %v488
    %v817 = vmul.f32 %v491, %v491
    %v818 = vmul.f32 %v496, %v496
    %v819 = vmul.f32 %v499, %v499
    %v820 = vmul.f32 %v504, %v504
    %v821 = vmul.f32 %v507, %v507
    %v822 = vmul.f32 %v512, %v512
    %v823 = vmul.f32 %v515, %v515
    %v824 = vmul.f32 %v520, %v520
    %v825 = vmul.f32 %v523, %v523
    %v826 = vmul.f32 %v528, %v528
    %v827 = vmul.f32 %v531, %v531
    %v828 = vmul.f32 %v536, %v536
    %v829 = vmul.f32 %v539, %v539
    %v830 = vmul.f32 %v544, %v544
    %v831 = vmul.f32 %v547, %v547
    %v832 = vmul.f32 %v552, %v552
    %v833 = vmul.f32 %v555, %v555
    %v834 = vmul.f32 %v560, %v560
    %v835 = vmul.f32 %v563, %v563
    %v836 = vmul.f32 %v568, %v568
    %v837 = vmul.f32 %v571, %v571
    %v838 = vmul.f32 %v576, %v576
    %v839 = vmul.f32 %v579, %v579
    %v840 = vmul.f32 %v584, %v584
    %v841 = vmul.f32 %v587, %v587
    %v842 = vmul.f32 %v592, %v592
    %v843 = vmul.f32 %v595, %v595
    %v844 = vmul.f32 %v600, %v600
    %v845 = vmul.f32 %v603, %v603
    %v846 = vmul.f32 %v608, %v608
    %v847 = vmul.f32 %v611, %v611
    %v848 = vmul.f32 %v616, %v616
    %v849 = vmul.f32 %v619, %v619
    %v850 = vmul.f32 %v624, %v624
    %v851 = vmul.f32 %v627, %v627
    %v852 = vmul.f32 %v632, %v632
    %v853 = vmul.f32 %v635, %v635
    %v854 = vmul.f32 %v640, %v640
    %v855 = vmul.f32 %v643, %v643
    %v856 = vmul.f32 %v648, %v648
    %v857 = vmul.f32 %v651, %v651
    %858 = vmatprep.subr.mxu0 0.0
    %859 = vmatpush1.msra.mxu0 %v794
    %860 = vmatprep.subr.mxu0 0.0
    %861 = vmatpush1.msra.mxu0 %v795
    %862 = vmatprep.subr.mxu0 0.0
    %863 = vmatpush1.msra.mxu0 %v796
    %864 = vmatprep.subr.mxu0 0.0
    %865 = vmatpush1.msra.mxu0 %v797
    %866 = vmatprep.subr.mxu0 0.0
    %867 = vmatpush1.msra.mxu0 %v798
    %868 = vmatprep.subr.mxu0 0.0
    %869 = vmatpush1.msra.mxu0 %v799
    %870 = vmatprep.subr.mxu0 0.0
    %871 = vmatpush1.msra.mxu0 %v800
    %872 = vmatprep.subr.mxu0 0.0
    %873 = vmatpush1.msra.mxu0 %v801
    %874 = vmatprep.subr.mxu0 0.0
    %875 = vmatpush1.msra.mxu0 %v802
    %876 = vmatprep.subr.mxu0 0.0
    %877 = vmatpush1.msra.mxu0 %v803
    %878 = vmatprep.subr.mxu0 0.0
    %879 = vmatpush1.msra.mxu0 %v804
    %880 = vmatprep.subr.mxu0 0.0
    %881 = vmatpush1.msra.mxu0 %v805
    %882 = vmatprep.subr.mxu0 0.0
    %883 = vmatpush1.msra.mxu0 %v806
    %884 = vmatprep.subr.mxu0 0.0
    %885 = vmatpush1.msra.mxu0 %v807
    %886 = vmatprep.subr.mxu0 0.0
    %887 = vmatpush1.msra.mxu0 %v808
    %888 = vmatprep.subr.mxu0 0.0
    %889 = vmatpush1.msra.mxu0 %v809
    %890 = vmatprep.subr.mxu0 0.0
    %891 = vmatpush1.msra.mxu0 %v810
    %892 = vmatprep.subr.mxu0 0.0
    %893 = vmatpush1.msra.mxu0 %v811
    %894 = vmatprep.subr.mxu0 0.0
    %895 = vmatpush1.msra.mxu0 %v812
    %896 = vmatprep.subr.mxu0 0.0
    %897 = vmatpush1.msra.mxu0 %v813
    %898 = vmatprep.subr.mxu0 0.0
    %899 = vmatpush1.msra.mxu0 %v814
    %900 = vmatprep.subr.mxu0 0.0
    %901 = vmatpush1.msra.mxu0 %v815
    %902 = vmatprep.subr.mxu0 0.0
    %903 = vmatpush1.msra.mxu0 %v816
    %904 = vmatprep.subr.mxu0 0.0
    %905 = vmatpush1.msra.mxu0 %v817
    %906 = vmatprep.subr.mxu0 0.0
    %907 = vmatpush1.msra.mxu0 %v818
    %908 = vmatprep.subr.mxu0 0.0
    %909 = vmatpush1.msra.mxu0 %v819
    %910 = vmatprep.subr.mxu0 0.0
    %911 = vmatpush1.msra.mxu0 %v820
    %912 = vmatprep.subr.mxu0 0.0
    %913 = vmatpush1.msra.mxu0 %v821
    %914 = vmatprep.subr.mxu0 0.0
    %915 = vmatpush1.msra.mxu0 %v822
    %916 = vmatprep.subr.mxu0 0.0
    %917 = vmatpush1.msra.mxu0 %v823
    %918 = vmatprep.subr.mxu0 0.0
    %919 = vmatpush1.msra.mxu0 %v824
    %920 = vmatprep.subr.mxu0 0.0
    %921 = vmatpush1.msra.mxu0 %v825
    %922 = vmatprep.mubr.f32.mxu0 0.001953125
    %923 = vmatmul.mubr.f32.gmra.mrb[0].mxu0 0.001953125
    %v924 = vpop.f32.mrb[0].mxu0
    %v925 = vadd.f32 0.0, %v924
    %v926 = vpop.f32.mrb[0].mxu0
    %927 = vdwg.mxu0
    %928 = vmatprep.subr.mxu0 0.0
    %929 = vmatpush1.msra.mxu0 %v826
    %930 = vmatprep.subr.mxu0 0.0
    %931 = vmatpush1.msra.mxu0 %v827
    %932 = vmatprep.subr.mxu0 0.0
    %933 = vmatpush1.msra.mxu0 %v828
    %934 = vmatprep.subr.mxu0 0.0
    %935 = vmatpush1.msra.mxu0 %v829
    %936 = vmatprep.subr.mxu0 0.0
    %937 = vmatpush1.msra.mxu0 %v830
    %938 = vmatprep.subr.mxu0 0.0
    %939 = vmatpush1.msra.mxu0 %v831
    %940 = vmatprep.subr.mxu0 0.0
    %941 = vmatpush1.msra.mxu0 %v832
    %942 = vmatprep.subr.mxu0 0.0
    %943 = vmatpush1.msra.mxu0 %v833
    %944 = vmatprep.subr.mxu0 0.0
    %945 = vmatpush1.msra.mxu0 %v834
    %946 = vmatprep.subr.mxu0 0.0
    %947 = vmatpush1.msra.mxu0 %v835
    %948 = vmatprep.subr.mxu0 0.0
    %949 = vmatpush1.msra.mxu0 %v836
    %950 = vmatprep.subr.mxu0 0.0
    %951 = vmatpush1.msra.mxu0 %v837
    %952 = vmatprep.subr.mxu0 0.0
    %953 = vmatpush1.msra.mxu0 %v838
    %954 = vmatprep.subr.mxu0 0.0
    %955 = vmatpush1.msra.mxu0 %v839
    %956 = vmatprep.subr.mxu0 0.0
    %957 = vmatpush1.msra.mxu0 %v840
    %958 = vmatprep.subr.mxu0 0.0
    %959 = vmatpush1.msra.mxu0 %v841
    %960 = vmatprep.subr.mxu0 0.0
    %961 = vmatpush1.msra.mxu0 %v842
    %962 = vmatprep.subr.mxu0 0.0
    %963 = vmatpush1.msra.mxu0 %v843
    %964 = vmatprep.subr.mxu0 0.0
    %965 = vmatpush1.msra.mxu0 %v844
    %966 = vmatprep.subr.mxu0 0.0
    %967 = vmatpush1.msra.mxu0 %v845
    %968 = vmatprep.subr.mxu0 0.0
    %969 = vmatpush1.msra.mxu0 %v846
    %970 = vmatprep.subr.mxu0 0.0
    %971 = vmatpush1.msra.mxu0 %v847
    %972 = vmatprep.subr.mxu0 0.0
    %973 = vmatpush1.msra.mxu0 %v848
    %974 = vmatprep.subr.mxu0 0.0
    %975 = vmatpush1.msra.mxu0 %v849
    %976 = vmatprep.subr.mxu0 0.0
    %977 = vmatpush1.msra.mxu0 %v850
    %978 = vmatprep.subr.mxu0 0.0
    %979 = vmatpush1.msra.mxu0 %v851
    %980 = vmatprep.subr.mxu0 0.0
    %981 = vmatpush1.msra.mxu0 %v852
    %982 = vmatprep.subr.mxu0 0.0
    %983 = vmatpush1.msra.mxu0 %v853
    %984 = vmatprep.subr.mxu0 0.0
    %985 = vmatpush1.msra.mxu0 %v854
    %986 = vmatprep.subr.mxu0 0.0
    %987 = vmatpush1.msra.mxu0 %v855
    %988 = vmatprep.subr.mxu0 0.0
    %989 = vmatpush1.msra.mxu0 %v856
    %990 = vmatprep.subr.mxu0 0.0
    %991 = vmatpush1.msra.mxu0 %v857
    %992 = vmatprep.mubr.f32.mxu0 0.001953125
    %993 = vmatmul.mubr.f32.gmra.mrb[0].mxu0 0.001953125
    %v994 = vpop.f32.mrb[0].mxu0
    %v995 = vadd.f32 %v925, %v994
    %v996 = vpop.f32.mrb[0].mxu0
    %997 = vdwg.mxu0
    %v998 = vmul.f32 %v791, %v791
    %v999 = vsub.f32 %v995, %v998
    %v1000 = vlaneseq
    %v1001 = vshrl.u32 %v1000, 7
    %v1002 = vsub.s32 0, %v1001
    %v1003 = vrot.slane %v791, %v1002
    %v1004 = vsub.f32 %v400, %v1003
    %v1005 = vsub.f32 %v403, %v1003
    %v1006 = vsub.f32 %v408, %v1003
    %v1007 = vsub.f32 %v411, %v1003
    %v1008 = vsub.f32 %v416, %v1003
    %v1009 = vsub.f32 %v419, %v1003
    %v1010 = vsub.f32 %v424, %v1003
    %v1011 = vsub.f32 %v427, %v1003
    %v1012 = vsub.f32 %v432, %v1003
    %v1013 = vsub.f32 %v435, %v1003
    %v1014 = vsub.f32 %v440, %v1003
    %v1015 = vsub.f32 %v443, %v1003
    %v1016 = vsub.f32 %v448, %v1003
    %v1017 = vsub.f32 %v451, %v1003
    %v1018 = vsub.f32 %v456, %v1003
    %v1019 = vsub.f32 %v459, %v1003
    %v1020 = vsub.f32 %v464, %v1003
    %v1021 = vsub.f32 %v467, %v1003
    %v1022 = vsub.f32 %v472, %v1003
    %v1023 = vsub.f32 %v475, %v1003
    %v1024 = vsub.f32 %v480, %v1003
    %v1025 = vsub.f32 %v483, %v1003
    %v1026 = vsub.f32 %v488, %v1003
    %v1027 = vsub.f32 %v491, %v1003
    %v1028 = vsub.f32 %v496, %v1003
    %v1029 = vsub.f32 %v499, %v1003
    %v1030 = vsub.f32 %v504, %v1003
    %v1031 = vsub.f32 %v507, %v1003
    %v1032 = vsub.f32 %v512, %v1003
    %v1033 = vsub.f32 %v515, %v1003
    %v1034 = vsub.f32 %v520, %v1003
    %v1035 = vsub.f32 %v523, %v1003
    %v1036 = vsub.f32 %v528, %v1003
    %v1037 = vsub.f32 %v531, %v1003
    %v1038 = vsub.f32 %v536, %v1003
    %v1039 = vsub.f32 %v539, %v1003
    %v1040 = vsub.f32 %v544, %v1003
    %v1041 = vsub.f32 %v547, %v1003
    %v1042 = vsub.f32 %v552, %v1003
    %v1043 = vsub.f32 %v555, %v1003
    %v1044 = vsub.f32 %v560, %v1003
    %v1045 = vsub.f32 %v563, %v1003
    %v1046 = vsub.f32 %v568, %v1003
    %v1047 = vsub.f32 %v571, %v1003
    %v1048 = vsub.f32 %v576, %v1003
    %v1049 = vsub.f32 %v579, %v1003
    %v1050 = vsub.f32 %v584, %v1003
    %v1051 = vsub.f32 %v587, %v1003
    %v1052 = vsub.f32 %v592, %v1003
    %v1053 = vsub.f32 %v595, %v1003
    %v1054 = vsub.f32 %v600, %v1003
    %v1055 = vsub.f32 %v603, %v1003
    %v1056 = vsub.f32 %v608, %v1003
    %v1057 = vsub.f32 %v611, %v1003
    %v1058 = vsub.f32 %v616, %v1003
    %v1059 = vsub.f32 %v619, %v1003
    %v1060 = vsub.f32 %v624, %v1003
    %v1061 = vsub.f32 %v627, %v1003
    %v1062 = vsub.f32 %v632, %v1003
    %v1063 = vsub.f32 %v635, %v1003
    %v1064 = vsub.f32 %v640, %v1003
    %v1065 = vsub.f32 %v643, %v1003
    %v1066 = vsub.f32 %v648, %v1003
    %v1067 = vsub.f32 %v651, %v1003
    %v1068 = vadd.f32 %v999, 1e-05
    %v1069 = vrsqrt.pop %v1068
    %v1070 = vlaneseq
    %v1071 = vshrl.u32 %v1070, 7
    %v1072 = vsub.s32 0, %v1071
    %v1073 = vrot.slane %v1069, %v1072
    %v1074 = vmul.f32 %v1004, %v1073
    %v1075 = vmul.f32 %v1005, %v1073
    %v1076 = vmul.f32 %v1006, %v1073
    %v1077 = vmul.f32 %v1007, %v1073
    %v1078 = vmul.f32 %v1008, %v1073
    %v1079 = vmul.f32 %v1009, %v1073
    %v1080 = vmul.f32 %v1010, %v1073
    %v1081 = vmul.f32 %v1011, %v1073
    %v1082 = vmul.f32 %v1012, %v1073
    %v1083 = vmul.f32 %v1013, %v1073
    %v1084 = vmul.f32 %v1014, %v1073
    %v1085 = vmul.f32 %v1015, %v1073
    %v1086 = vmul.f32 %v1016, %v1073
    %v1087 = vmul.f32 %v1017, %v1073
    %v1088 = vmul.f32 %v1018, %v1073
    %v1089 = vmul.f32 %v1019, %v1073
    %v1090 = vmul.f32 %v1020, %v1073
    %v1091 = vmul.f32 %v1021, %v1073
    %v1092 = vmul.f32 %v1022, %v1073
    %v1093 = vmul.f32 %v1023, %v1073
    %v1094 = vmul.f32 %v1024, %v1073
    %v1095 = vmul.f32 %v1025, %v1073
    %v1096 = vmul.f32 %v1026, %v1073
    %v1097 = vmul.f32 %v1027, %v1073
    %v1098 = vmul.f32 %v1028, %v1073
    %v1099 = vmul.f32 %v1029, %v1073
    %v1100 = vmul.f32 %v1030, %v1073
    %v1101 = vmul.f32 %v1031, %v1073
    %v1102 = vmul.f32 %v1032, %v1073
    %v1103 = vmul.f32 %v1033, %v1073
    %v1104 = vmul.f32 %v1034, %v1073
    %v1105 = vmul.f32 %v1035, %v1073
    %v1106 = vmul.f32 %v1036, %v1073
    %v1107 = vmul.f32 %v1037, %v1073
    %v1108 = vmul.f32 %v1038, %v1073
    %v1109 = vmul.f32 %v1039, %v1073
    %v1110 = vmul.f32 %v1040, %v1073
    %v1111 = vmul.f32 %v1041, %v1073
    %v1112 = vmul.f32 %v1042, %v1073
    %v1113 = vmul.f32 %v1043, %v1073
    %v1114 = vmul.f32 %v1044, %v1073
    %v1115 = vmul.f32 %v1045, %v1073
    %v1116 = vmul.f32 %v1046, %v1073
    %v1117 = vmul.f32 %v1047, %v1073
    %v1118 = vmul.f32 %v1048, %v1073
    %v1119 = vmul.f32 %v1049, %v1073
    %v1120 = vmul.f32 %v1050, %v1073
    %v1121 = vmul.f32 %v1051, %v1073
    %v1122 = vmul.f32 %v1052, %v1073
    %v1123 = vmul.f32 %v1053, %v1073
    %v1124 = vmul.f32 %v1054, %v1073
    %v1125 = vmul.f32 %v1055, %v1073
    %v1126 = vmul.f32 %v1056, %v1073
    %v1127 = vmul.f32 %v1057, %v1073
    %v1128 = vmul.f32 %v1058, %v1073
    %v1129 = vmul.f32 %v1059, %v1073
    %v1130 = vmul.f32 %v1060, %v1073
    %v1131 = vmul.f32 %v1061, %v1073
    %v1132 = vmul.f32 %v1062, %v1073
    %v1133 = vmul.f32 %v1063, %v1073
    %v1134 = vmul.f32 %v1064, %v1073
    %v1135 = vmul.f32 %v1065, %v1073
    %v1136 = vmul.f32 %v1066, %v1073
    %v1137 = vmul.f32 %v1067, %v1073
    %v1138 = vmax.f32 %v1074, 0.0
    %v1139 = vmax.f32 %v1075, 0.0
    %v1140 = vmax.f32 %v1076, 0.0
    %v1141 = vmax.f32 %v1077, 0.0
    %v1142 = vmax.f32 %v1078, 0.0
    %v1143 = vmax.f32 %v1079, 0.0
    %v1144 = vmax.f32 %v1080, 0.0
    %v1145 = vmax.f32 %v1081, 0.0
    %v1146 = vmax.f32 %v1082, 0.0
    %v1147 = vmax.f32 %v1083, 0.0
    %v1148 = vmax.f32 %v1084, 0.0
    %v1149 = vmax.f32 %v1085, 0.0
    %v1150 = vmax.f32 %v1086, 0.0
    %v1151 = vmax.f32 %v1087, 0.0
    %v1152 = vmax.f32 %v1088, 0.0
    %v1153 = vmax.f32 %v1089, 0.0
    %v1154 = vmax.f32 %v1090, 0.0
    %v1155 = vmax.f32 %v1091, 0.0
    %v1156 = vmax.f32 %v1092, 0.0
    %v1157 = vmax.f32 %v1093, 0.0
    %v1158 = vmax.f32 %v1094, 0.0
    %v1159 = vmax.f32 %v1095, 0.0
    %v1160 = vmax.f32 %v1096, 0.0
    %v1161 = vmax.f32 %v1097, 0.0
    %v1162 = vmax.f32 %v1098, 0.0
    %v1163 = vmax.f32 %v1099, 0.0
    %v1164 = vmax.f32 %v1100, 0.0
    %v1165 = vmax.f32 %v1101, 0.0
    %v1166 = vmax.f32 %v1102, 0.0
    %v1167 = vmax.f32 %v1103, 0.0
    %v1168 = vmax.f32 %v1104, 0.0
    %v1169 = vmax.f32 %v1105, 0.0
    %v1170 = vmax.f32 %v1106, 0.0
    %v1171 = vmax.f32 %v1107, 0.0
    %v1172 = vmax.f32 %v1108, 0.0
    %v1173 = vmax.f32 %v1109, 0.0
    %v1174 = vmax.f32 %v1110, 0.0
    %v1175 = vmax.f32 %v1111, 0.0
    %v1176 = vmax.f32 %v1112, 0.0
    %v1177 = vmax.f32 %v1113, 0.0
    %v1178 = vmax.f32 %v1114, 0.0
    %v1179 = vmax.f32 %v1115, 0.0
    %v1180 = vmax.f32 %v1116, 0.0
    %v1181 = vmax.f32 %v1117, 0.0
    %v1182 = vmax.f32 %v1118, 0.0
    %v1183 = vmax.f32 %v1119, 0.0
    %v1184 = vmax.f32 %v1120, 0.0
    %v1185 = vmax.f32 %v1121, 0.0
    %v1186 = vmax.f32 %v1122, 0.0
    %v1187 = vmax.f32 %v1123, 0.0
    %v1188 = vmax.f32 %v1124, 0.0
    %v1189 = vmax.f32 %v1125, 0.0
    %v1190 = vmax.f32 %v1126, 0.0
    %v1191 = vmax.f32 %v1127, 0.0
    %v1192 = vmax.f32 %v1128, 0.0
    %v1193 = vmax.f32 %v1129, 0.0
    %v1194 = vmax.f32 %v1130, 0.0
    %v1195 = vmax.f32 %v1131, 0.0
    %v1196 = vmax.f32 %v1132, 0.0
    %v1197 = vmax.f32 %v1133, 0.0
    %v1198 = vmax.f32 %v1134, 0.0
    %v1199 = vmax.f32 %v1135, 0.0
    %v1200 = vmax.f32 %v1136, 0.0
    %v1201 = vmax.f32 %v1137, 0.0
    %v1202 = vld [vmem:[%s2] sm:$0xff]
    %v1204 = vcombine.high %v1202, %v1202
    %v1206 = vunpack.c.l.s4 1983009808
    %v1207 = vunpack.c.0.s8 %v1206
    %v1208 = vlaneseq
    %v1209 = vshrl.u32 %v1208, 7
    %v1210 = vsub.s32 %v1207, %v1209
    %v1211 = vrot.slane %v1202, %v1210
    %v1213 = vunpack.c.l.s4 1983009808
    %v1214 = vunpack.c.0.s8 %v1213
    %v1215 = vlaneseq
    %v1216 = vshrl.u32 %v1215, 7
    %v1217 = vsub.s32 %v1214, %v1216
    %v1218 = vrot.slane %v1204, %v1217
    %v1219 = vcombine.high %v1211, %v1211
    %v1220 = vcombine.high %v1218, %v1218
    %1225 = vmatprep.subr.mxu0 0.0
    %1226 = vmatpush1.msra.mxu0 %v1138
    %1227 = vmatprep.subr.mxu0 0.0
    %1228 = vmatpush1.msra.mxu0 %v1139
    %1229 = vmatprep.subr.mxu0 0.0
    %1230 = vmatpush1.msra.mxu0 %v1140
    %1231 = vmatprep.subr.mxu0 0.0
    %1232 = vmatpush1.msra.mxu0 %v1141
    %1233 = vmatprep.subr.mxu0 0.0
    %1234 = vmatpush1.msra.mxu0 %v1142
    %1235 = vmatprep.subr.mxu0 0.0
    %1236 = vmatpush1.msra.mxu0 %v1143
    %1237 = vmatprep.subr.mxu0 0.0
    %1238 = vmatpush1.msra.mxu0 %v1144
    %1239 = vmatprep.subr.mxu0 0.0
    %1240 = vmatpush1.msra.mxu0 %v1145
    %1241 = vmatprep.subr.mxu0 0.0
    %1242 = vmatpush1.msra.mxu0 %v1146
    %1243 = vmatprep.subr.mxu0 0.0
    %1244 = vmatpush1.msra.mxu0 %v1147
    %1245 = vmatprep.subr.mxu0 0.0
    %1246 = vmatpush1.msra.mxu0 %v1148
    %1247 = vmatprep.subr.mxu0 0.0
    %1248 = vmatpush1.msra.mxu0 %v1149
    %1249 = vmatprep.subr.mxu0 0.0
    %1250 = vmatpush1.msra.mxu0 %v1150
    %1251 = vmatprep.subr.mxu0 0.0
    %1252 = vmatpush1.msra.mxu0 %v1151
    %1253 = vmatprep.subr.mxu0 0.0
    %1254 = vmatpush1.msra.mxu0 %v1152
    %1255 = vmatprep.subr.mxu0 0.0
    %1256 = vmatpush1.msra.mxu0 %v1153
    %1257 = vmatprep.subr.mxu0 0.0
    %1258 = vmatpush1.msra.mxu0 %v1154
    %1259 = vmatprep.subr.mxu0 0.0
    %1260 = vmatpush1.msra.mxu0 %v1155
    %1261 = vmatprep.subr.mxu0 0.0
    %1262 = vmatpush1.msra.mxu0 %v1156
    %1263 = vmatprep.subr.mxu0 0.0
    %1264 = vmatpush1.msra.mxu0 %v1157
    %1265 = vmatprep.subr.mxu0 0.0
    %1266 = vmatpush1.msra.mxu0 %v1158
    %1267 = vmatprep.subr.mxu0 0.0
    %1268 = vmatpush1.msra.mxu0 %v1159
    %1269 = vmatprep.subr.mxu0 0.0
    %1270 = vmatpush1.msra.mxu0 %v1160
    %1271 = vmatprep.subr.mxu0 0.0
    %1272 = vmatpush1.msra.mxu0 %v1161
    %1273 = vmatprep.subr.mxu0 0.0
    %1274 = vmatpush1.msra.mxu0 %v1162
    %1275 = vmatprep.subr.mxu0 0.0
    %1276 = vmatpush1.msra.mxu0 %v1163
    %1277 = vmatprep.subr.mxu0 0.0
    %1278 = vmatpush1.msra.mxu0 %v1164
    %1279 = vmatprep.subr.mxu0 0.0
    %1280 = vmatpush1.msra.mxu0 %v1165
    %1281 = vmatprep.subr.mxu0 0.0
    %1282 = vmatpush1.msra.mxu0 %v1166
    %1283 = vmatprep.subr.mxu0 0.0
    %1284 = vmatpush1.msra.mxu0 %v1167
    %1285 = vmatprep.subr.mxu0 0.0
    %1286 = vmatpush1.msra.mxu0 %v1168
    %1287 = vmatprep.subr.mxu0 0.0
    %1288 = vmatpush1.msra.mxu0 %v1169
    %1289 = vmatprep.mubr.f32.mxu0 %v1219
    %1290 = vmatmul.mubr.f32.gmra.mrb[0].mxu0 %v1211
    %v1291 = vpop.f32.mrb[0].mxu0
    %v1292 = vadd.f32 0.0, %v1291
    %v1293 = vpop.f32.mrb[0].mxu0
    %1294 = vdwg.mxu0
    %1295 = vmatprep.subr.mxu0 0.0
    %1296 = vmatpush1.msra.mxu0 %v1170
    %1297 = vmatprep.subr.mxu0 0.0
    %1298 = vmatpush1.msra.mxu0 %v1171
    %1299 = vmatprep.subr.mxu0 0.0
    %1300 = vmatpush1.msra.mxu0 %v1172
    %1301 = vmatprep.subr.mxu0 0.0
    %1302 = vmatpush1.msra.mxu0 %v1173
    %1303 = vmatprep.subr.mxu0 0.0
    %1304 = vmatpush1.msra.mxu0 %v1174
    %1305 = vmatprep.subr.mxu0 0.0
    %1306 = vmatpush1.msra.mxu0 %v1175
    %1307 = vmatprep.subr.mxu0 0.0
    %1308 = vmatpush1.msra.mxu0 %v1176
    %1309 = vmatprep.subr.mxu0 0.0
    %1310 = vmatpush1.msra.mxu0 %v1177
    %1311 = vmatprep.subr.mxu0 0.0
    %1312 = vmatpush1.msra.mxu0 %v1178
    %1313 = vmatprep.subr.mxu0 0.0
    %1314 = vmatpush1.msra.mxu0 %v1179
    %1315 = vmatprep.subr.mxu0 0.0
    %1316 = vmatpush1.msra.mxu0 %v1180
    %1317 = vmatprep.subr.mxu0 0.0
    %1318 = vmatpush1.msra.mxu0 %v1181
    %1319 = vmatprep.subr.mxu0 0.0
    %1320 = vmatpush1.msra.mxu0 %v1182
    %1321 = vmatprep.subr.mxu0 0.0
    %1322 = vmatpush1.msra.mxu0 %v1183
    %1323 = vmatprep.subr.mxu0 0.0
    %1324 = vmatpush1.msra.mxu0 %v1184
    %1325 = vmatprep.subr.mxu0 0.0
    %1326 = vmatpush1.msra.mxu0 %v1185
    %1327 = vmatprep.subr.mxu0 0.0
    %1328 = vmatpush1.msra.mxu0 %v1186
    %1329 = vmatprep.subr.mxu0 0.0
    %1330 = vmatpush1.msra.mxu0 %v1187
    %1331 = vmatprep.subr.mxu0 0.0
    %1332 = vmatpush1.msra.mxu0 %v1188
    %1333 = vmatprep.subr.mxu0 0.0
    %1334 = vmatpush1.msra.mxu0 %v1189
    %1335 = vmatprep.subr.mxu0 0.0
    %1336 = vmatpush1.msra.mxu0 %v1190
    %1337 = vmatprep.subr.mxu0 0.0
    %1338 = vmatpush1.msra.mxu0 %v1191
    %1339 = vmatprep.subr.mxu0 0.0
    %1340 = vmatpush1.msra.mxu0 %v1192
    %1341 = vmatprep.subr.mxu0 0.0
    %1342 = vmatpush1.msra.mxu0 %v1193
    %1343 = vmatprep.subr.mxu0 0.0
    %1344 = vmatpush1.msra.mxu0 %v1194
    %1345 = vmatprep.subr.mxu0 0.0
    %1346 = vmatpush1.msra.mxu0 %v1195
    %1347 = vmatprep.subr.mxu0 0.0
    %1348 = vmatpush1.msra.mxu0 %v1196
    %1349 = vmatprep.subr.mxu0 0.0
    %1350 = vmatpush1.msra.mxu0 %v1197
    %1351 = vmatprep.subr.mxu0 0.0
    %1352 = vmatpush1.msra.mxu0 %v1198
    %1353 = vmatprep.subr.mxu0 0.0
    %1354 = vmatpush1.msra.mxu0 %v1199
    %1355 = vmatprep.subr.mxu0 0.0
    %1356 = vmatpush1.msra.mxu0 %v1200
    %1357 = vmatprep.subr.mxu0 0.0
    %1358 = vmatpush1.msra.mxu0 %v1201
    %1359 = vmatprep.mubr.f32.mxu0 %v1220
    %1360 = vmatmul.mubr.f32.gmra.mrb[0].mxu0 %v1218
    %v1361 = vpop.f32.mrb[0].mxu0
    %v1362 = vadd.f32 %v1292, %v1361
    %v1363 = vpop.f32.mrb[0].mxu0
    %1364 = vdwg.mxu0
    %v1365 = vld [vmem:[%s3] sm:$0xff]
    %v1366 = vld [vmem:[%s3 + $0x8] sm:$0xff]
    %v1367 = vld [vmem:[%s3 + $0x10] sm:$0xff]
    %v1368 = vld [vmem:[%s3 + $0x18] sm:$0xff]
    %v1369 = vld [vmem:[%s4] sm:$0x1]
    %v1371 = vlaneseq
    %v1372 = vshrl.u32 %v1371, 7
    %v1373 = vsub.s32 0, %v1372
    %v1374 = vrot.slane %v1369, %v1373
    %v1377 = vsel %vm268, %v1362, 0
    %1379 = vmatprep.subr.mxu0 0.0
    %1380 = vmatpush1.msra.mxu0 %v1365
    %1381 = vmatprep.subr.mxu0 0.0
    %1382 = vmatpush1.msra.mxu0 %v1366
    %1383 = vmatprep.subr.mxu0 0.0
    %1384 = vmatpush1.msra.mxu0 %v1367
    %1385 = vmatprep.subr.mxu0 0.0
    %1386 = vmatpush1.msra.mxu0 %v1368
    %1387 = vmatprep.subr.mxu0 0.0
    %1388 = vmatpush1.msra.mxu0 0.0
    %1389 = vmatprep.subr.mxu0 0.0
    %1390 = vmatpush1.msra.mxu0 0.0
    %1391 = vmatprep.subr.mxu0 0.0
    %1392 = vmatpush1.msra.mxu0 0.0
    %1393 = vmatprep.subr.mxu0 0.0
    %1394 = vmatpush1.msra.mxu0 0.0
    %1395 = vmatprep.subr.mxu0 0.0
    %1396 = vmatpush1.msra.mxu0 0.0
    %1397 = vmatprep.subr.mxu0 0.0
    %1398 = vmatpush1.msra.mxu0 0.0
    %1399 = vmatprep.subr.mxu0 0.0
    %1400 = vmatpush1.msra.mxu0 0.0
    %1401 = vmatprep.subr.mxu0 0.0
    %1402 = vmatpush1.msra.mxu0 0.0
    %1403 = vmatprep.subr.mxu0 0.0
    %1404 = vmatpush1.msra.mxu0 0.0
    %1405 = vmatprep.subr.mxu0 0.0
    %1406 = vmatpush1.msra.mxu0 0.0
    %1407 = vmatprep.subr.mxu0 0.0
    %1408 = vmatpush1.msra.mxu0 0.0
    %1409 = vmatprep.subr.mxu0 0.0
    %1410 = vmatpush1.msra.mxu0 0.0
    %1411 = vmatprep.subr.mxu0 0.0
    %1412 = vmatpush1.msra.mxu0 0.0
    %1413 = vmatprep.subr.mxu0 0.0
    %1414 = vmatpush1.msra.mxu0 0.0
    %1415 = vmatprep.subr.mxu0 0.0
    %1416 = vmatpush1.msra.mxu0 0.0
    %1417 = vmatprep.subr.mxu0 0.0
    %1418 = vmatpush1.msra.mxu0 0.0
    %1419 = vmatprep.subr.mxu0 0.0
    %1420 = vmatpush1.msra.mxu0 0.0
    %1421 = vmatprep.subr.mxu0 0.0
    %1422 = vmatpush1.msra.mxu0 0.0
    %1423 = vmatprep.subr.mxu0 0.0
    %1424 = vmatpush1.msra.mxu0 0.0
    %1425 = vmatprep.subr.mxu0 0.0
    %1426 = vmatpush1.msra.mxu0 0.0
    %1427 = vmatprep.subr.mxu0 0.0
    %1428 = vmatpush1.msra.mxu0 0.0
    %1429 = vmatprep.subr.mxu0 0.0
    %1430 = vmatpush1.msra.mxu0 0.0
    %1431 = vmatprep.subr.mxu0 0.0
    %1432 = vmatpush1.msra.mxu0 0.0
    %1433 = vmatprep.subr.mxu0 0.0
    %1434 = vmatpush1.msra.mxu0 0.0
    %1435 = vmatprep.subr.mxu0 0.0
    %1436 = vmatpush1.msra.mxu0 0.0
    %1437 = vmatprep.subr.mxu0 0.0
    %1438 = vmatpush1.msra.mxu0 0.0
    %1439 = vmatprep.subr.mxu0 0.0
    %1440 = vmatpush1.msra.mxu0 0.0
    %1441 = vmatprep.subr.mxu0 0.0
    %1442 = vmatpush1.msra.mxu0 0.0
    %1443 = vmatprep.mubr.f32.mxu0 0.0
    %1444 = vmatmul.mubr.f32.gmra.mrb[0].mxu0 %v1377
    %v1445 = vpop.f32.mrb[0].mxu0
    %v1446 = vadd.f32 %v1374, %v1445
    %v1447 = vpop.f32.mrb[0].mxu0
    %1448 = vdwg.mxu0
    %v1449 = vmax.f32 %v1446, 0.0
    %vm1450 = vcmask 254976
    %v1451 = vsel %vm1450, %v1449, 0.0
    %v1452 = vrot.slane %v1451, 4
    %v1453 = vadd.f32 %v1451, %v1452
    %v1454 = vrot.slane %v1453, 2
    %v1455 = vadd.f32 %v1453, %v1454
    %v1456 = vrot.slane %v1455, 1
    %v1457 = vadd.f32 %v1455, %v1456
    %v1458 = vrcp.pop 2.0
    %v1459 = vmul.f32 %v1457, %v1458
    %v1460 = vmul.f32 %v1449, %v1449
    %v1461 = vsel %vm1450, %v1460, 0.0
    %v1462 = vrot.slane %v1461, 4
    %v1463 = vadd.f32 %v1461, %v1462
    %v1464 = vrot.slane %v1463, 2
    %v1465 = vadd.f32 %v1463, %v1464
    %v1466 = vrot.slane %v1465, 1
    %v1467 = vadd.f32 %v1465, %v1466
    %v1468 = vmul.f32 %v1467, %v1458
    %v1469 = vmul.f32 %v1459, %v1459
    %v1470 = vsub.f32 %v1468, %v1469
    %v1471 = vsub.f32 %v1449, %v1459
    %v1472 = vadd.f32 %v1470, 1e-05
    %v1473 = vrsqrt.pop %v1472
    %v1474 = vmul.f32 %v1471, %v1473
    %v1475 = vld [vmem:[%s5] sm:$0xff]
    %v1476 = vld [vmem:[%s5 + $0x8] sm:$0xff]
    %v1477 = vld [vmem:[%s5 + $0x10] sm:$0xff]
    %v1478 = vld [vmem:[%s5 + $0x18] sm:$0xff]
    %v1479 = vld [vmem:[%s6] sm:$0x1]
    %v1481 = vlaneseq
    %v1482 = vshrl.u32 %v1481, 7
    %v1483 = vsub.s32 0, %v1482
    %v1484 = vrot.slane %v1479, %v1483
    %v1487 = vsel %vm268, %v1474, 0
    %1489 = vmatprep.subr.mxu0 0.0
    %1490 = vmatpush1.msra.mxu0 %v1475
    %1491 = vmatprep.subr.mxu0 0.0
    %1492 = vmatpush1.msra.mxu0 %v1476
    %1493 = vmatprep.subr.mxu0 0.0
    %1494 = vmatpush1.msra.mxu0 %v1477
    %1495 = vmatprep.subr.mxu0 0.0
    %1496 = vmatpush1.msra.mxu0 %v1478
    %1497 = vmatprep.subr.mxu0 0.0
    %1498 = vmatpush1.msra.mxu0 0.0
    %1499 = vmatprep.subr.mxu0 0.0
    %1500 = vmatpush1.msra.mxu0 0.0
    %1501 = vmatprep.subr.mxu0 0.0
    %1502 = vmatpush1.msra.mxu0 0.0
    %1503 = vmatprep.subr.mxu0 0.0
    %1504 = vmatpush1.msra.mxu0 0.0
    %1505 = vmatprep.subr.mxu0 0.0
    %1506 = vmatpush1.msra.mxu0 0.0
    %1507 = vmatprep.subr.mxu0 0.0
    %1508 = vmatpush1.msra.mxu0 0.0
    %1509 = vmatprep.subr.mxu0 0.0
    %1510 = vmatpush1.msra.mxu0 0.0
    %1511 = vmatprep.subr.mxu0 0.0
    %1512 = vmatpush1.msra.mxu0 0.0
    %1513 = vmatprep.subr.mxu0 0.0
    %1514 = vmatpush1.msra.mxu0 0.0
    %1515 = vmatprep.subr.mxu0 0.0
    %1516 = vmatpush1.msra.mxu0 0.0
    %1517 = vmatprep.subr.mxu0 0.0
    %1518 = vmatpush1.msra.mxu0 0.0
    %1519 = vmatprep.subr.mxu0 0.0
    %1520 = vmatpush1.msra.mxu0 0.0
    %1521 = vmatprep.subr.mxu0 0.0
    %1522 = vmatpush1.msra.mxu0 0.0
    %1523 = vmatprep.subr.mxu0 0.0
    %1524 = vmatpush1.msra.mxu0 0.0
    %1525 = vmatprep.subr.mxu0 0.0
    %1526 = vmatpush1.msra.mxu0 0.0
    %1527 = vmatprep.subr.mxu0 0.0
    %1528 = vmatpush1.msra.mxu0 0.0
    %1529 = vmatprep.subr.mxu0 0.0
    %1530 = vmatpush1.msra.mxu0 0.0
    %1531 = vmatprep.subr.mxu0 0.0
    %1532 = vmatpush1.msra.mxu0 0.0
    %1533 = vmatprep.subr.mxu0 0.0
    %1534 = vmatpush1.msra.mxu0 0.0
    %1535 = vmatprep.subr.mxu0 0.0
    %1536 = vmatpush1.msra.mxu0 0.0
    %1537 = vmatprep.subr.mxu0 0.0
    %1538 = vmatpush1.msra.mxu0 0.0
    %1539 = vmatprep.subr.mxu0 0.0
    %1540 = vmatpush1.msra.mxu0 0.0
    %1541 = vmatprep.subr.mxu0 0.0
    %1542 = vmatpush1.msra.mxu0 0.0
    %1543 = vmatprep.subr.mxu0 0.0
    %1544 = vmatpush1.msra.mxu0 0.0
    %1545 = vmatprep.subr.mxu0 0.0
    %1546 = vmatpush1.msra.mxu0 0.0
    %1547 = vmatprep.subr.mxu0 0.0
    %1548 = vmatpush1.msra.mxu0 0.0
    %1549 = vmatprep.subr.mxu0 0.0
    %1550 = vmatpush1.msra.mxu0 0.0
    %1551 = vmatprep.subr.mxu0 0.0
    %1552 = vmatpush1.msra.mxu0 0.0
    %1553 = vmatprep.mubr.f32.mxu0 0.0
    %1554 = vmatmul.mubr.f32.gmra.mrb[0].mxu0 %v1487
    %v1555 = vpop.f32.mrb[0].mxu0
    %v1556 = vadd.f32 %v1484, %v1555
    %v1557 = vpop.f32.mrb[0].mxu0
    %1558 = vdwg.mxu0
    %vm1559 = vcmask 17408
    %1560 = vst.msk [vmem:[#allocation2] sm:$0x3] %vm1559, %v1556
    // Predicated region
    $region30: #{classifier_forward.1} parent=1 // pred_check
      _
    $region31: #{classifier_forward.1} parent=1 // pred_check_branch
      %1562 = sbr.rel (0) target = $region33
    $region32: #{classifier_forward.1} parent=1 // pred_region
      %s1564 = ssub.s32 32, 32
      %1565 = vsyncadd [#allocation3], %s1564
      %s1567 = sshll.u32 [#allocation2], 4
      %s1568 = int_to_ptr.vmem [resolvable:$true] %s1567
      %1570 = dma.vmem_to_hbm [thread:$0]  %s1568, 32, %s7, [#allocation3]
    $region33: #{classifier_forward.1} parent=1 // pred_fallthru
      _
    // Predicated region
    $region34: #{classifier_forward.1} parent=1 // pred_check
      _
    $region35: #{classifier_forward.1} parent=1 // pred_check_branch
      %1572 = sbr.rel (0) target = $region37
    $region36: #{classifier_forward.1} parent=1 // pred_region
      %1573 = dma.done [#allocation3], 32
    $region37: #{classifier_forward.1} parent=1 // pred_fallthru
      _
    %1574 = vsyncpa [#allocation3], 1

</llo_original>
